<compile_context>
chip_gen: v7x
topology: tpu7x:2x2x1
jax: 0.10.0
libtpu: 0.0.40
codegen_flags: <defaults>
</compile_context>

<pallas_src>
import jax
import jax.numpy as jnp
import numpy as np
from jax.experimental import pallas as pl
from jax.experimental.pallas import tpu as pltpu

FILTER_LEN = 101
PAD = FILTER_LEN // 2          # 50
HALO = 128                     # lane-aligned per-row halo, >= 2*PAD


# ---------------------------------------------------------------------------
# Pallas kernel: one MXU matmul per (block_rows, TILE) output tile.
#   x_ref : (block_rows, TILE+HALO) f32   overlapped signal rows
#   w_ref : (TILE+HALO, TILE)       f32   banded Toeplitz FIR matrix (resident)
#   o_ref : (block_rows, TILE)      f32
# ---------------------------------------------------------------------------
def _fir_matmul_kernel(x_ref, w_ref, o_ref):
    o_ref[...] = jnp.dot(
        x_ref[...], w_ref[...],
        preferred_element_type=jnp.float32,
        precision=jax.lax.Precision.HIGHEST,   # full-f32 MXU passes (keeps 1e-4 tol)
    )


def _fir_toeplitz(w, k_dim, n_dim):
    """W[i, j] = w[i - j] if 0 <= i - j < len(w) else 0.  Shape (k_dim, n_dim)."""
    i = jnp.arange(k_dim, dtype=jnp.int32)[:, None]
    j = jnp.arange(n_dim, dtype=jnp.int32)[None, :]
    d = i - j
    valid = (d >= 0) & (d < w.shape[0])
    return jnp.where(valid, w[jnp.clip(d, 0, w.shape[0] - 1)], 0.0).astype(jnp.float32)


def fir_same_pallas(x, w, *, tile=256, block_rows=32):
    """x: (T,) f32, w: (101,) f32 -> (T,) f32. out[t] = sum_k w[k] * x[t + k - 50]."""
    T = x.shape[0]
    x = x.astype(jnp.float32)
    w = w.astype(jnp.float32)

    n_rows = pl.cdiv(T, tile)
    n_blocks = pl.cdiv(n_rows, block_rows)
    n_rows_p = n_blocks * block_rows
    total = n_rows_p * tile

    # Zero-padded flat signal [PAD zeros | x | zeros]; length total+tile so the
    # overlapped-row view below never indexes out of range.
    # TODO(synk): the padded/overlapped copy (~1.5x T at tile=256) could be removed
    # with a manual-halo DMA path (memory_space=pl.ANY + make_async_copy).
    xp = jnp.pad(x, (PAD, total + tile - PAD - T))

    # Overlapped-row (sublane+lane dense) layout: x_rows[r, i] = xp[r*tile + i].
    a = xp[:total].reshape(n_rows_p, tile)
    b = xp[tile:tile + total].reshape(n_rows_p, tile)[:, :HALO]
    x_rows = jnp.concatenate([a, b], axis=1)              # (n_rows_p, tile+HALO)

    w_mat = _fir_toeplitz(w, tile + HALO, tile)            # (tile+HALO, tile)

    out = pl.pallas_call(
        _fir_matmul_kernel,
        out_shape=jax.ShapeDtypeStruct((n_rows_p, tile), jnp.float32),
        grid_spec=pltpu.PrefetchScalarGridSpec(
            num_scalar_prefetch=0,
            grid=(n_blocks,),
            in_specs=[
                pl.BlockSpec((block_rows, tile + HALO), lambda g: (g, 0)),
                pl.BlockSpec((tile + HALO, tile), lambda g: (0, 0)),
            ],
            out_specs=pl.BlockSpec((block_rows, tile), lambda g: (g, 0)),
        ),
        compiler_params=pltpu.CompilerParams(
            dimension_semantics=("parallel",)),
    )(x_rows, w_mat)
    return out.reshape(-1)[:T]


# ---------------------------------------------------------------------------
# Filter construction (101 elements — plain JAX glue).
# ---------------------------------------------------------------------------
def _blackman_window(n_win):
    # torch.blackman_window default periodic=True -> denominator = n_win
    n = jnp.arange(n_win, dtype=jnp.float32)
    return (0.42 - 0.5 * jnp.cos(2.0 * jnp.pi * n / n_win)
            + 0.08 * jnp.cos(4.0 * jnp.pi * n / n_win))


def _safe_sinc(x):
    safe = jnp.where(x == 0.0, 1.0, x)
    return jnp.where(x == 0.0, 1.0, jnp.sin(safe) / safe)


def notch_filter(notch_freq, filter_width=FILTER_LEN, notch_width=0.05):
    pad = filter_width // 2
    inputs = jnp.arange(filter_width, dtype=jnp.float32) - pad
    notch_freq = notch_freq + notch_width
    window = _blackman_window(filter_width)

    hlpf = _safe_sinc(3.0 * (notch_freq - notch_width) * inputs) * window
    hlpf = hlpf / jnp.sum(hlpf)
    hhpf = _safe_sinc(3.0 * (notch_freq + notch_width) * inputs) * window
    hhpf = hhpf / (-jnp.sum(hhpf))
    hhpf = hhpf.at[pad].add(1.0)
    return hlpf + hhpf


def fir_same_ref(x, w):
    """Plain-JAX 'same' cross-correlation (filter build + numerical reference)."""
    pad = w.shape[0] // 2
    xp = jnp.pad(x, (pad, pad))
    idx = jnp.arange(x.shape[0])[:, None] + jnp.arange(w.shape[0])[None, :]
    return jnp.sum(xp[idx] * w[None, :], axis=-1)


# ---------------------------------------------------------------------------
# DropFreq.forward  (fully traceable / jit-friendly)
# ---------------------------------------------------------------------------
def drop_freq_forward(waveform, key,
                      drop_freq_low=1e-14, drop_freq_high=1.0,
                      drop_count_low=1, drop_count_high=2,
                      drop_width=0.05, drop_prob=1.0):
    k_prob, k_count, k_freq = jax.random.split(key, 3)
    waveform = waveform.astype(jnp.float32)

    # stochastic skip: applying the identity (delta) filter == returning the clone
    apply_drop = jax.random.uniform(k_prob, ()) <= drop_prob
    drop_count = jax.random.randint(k_count, (), drop_count_low, drop_count_high + 1)
    drop_range = drop_freq_high - drop_freq_low
    drop_frequency = (jax.random.uniform(k_freq, (drop_count_high,), jnp.float32)
                      * drop_range + drop_freq_low)

    delta = jnp.zeros((FILTER_LEN,), jnp.float32).at[PAD].set(1.0)
    drop_filter = delta
    for i in range(drop_count_high):
        nk = notch_filter(drop_frequency[i], FILTER_LEN, drop_width)
        nk = jnp.where(i < drop_count, nk, delta)   # unused notch -> identity
        drop_filter = fir_same_ref(drop_filter, nk)
    drop_filter = jnp.where(apply_drop, drop_filter, delta)

    # Hot path: FIR the waveform with the Pallas MXU kernel.
    out = fir_same_pallas(waveform, drop_filter)
    return out, drop_filter


if __name__ == "__main__":
    key = jax.random.PRNGKey(0)
    k_wave, k_drop = jax.random.split(key)

    T = 16384                                     # [time] input (64 rows x 256)
    waveform = jax.random.normal(k_wave, (T,), dtype=jnp.float32)

    fwd = jax.jit(drop_freq_forward)
    out, drop_filter = fwd(waveform, k_drop)
    out = jax.block_until_ready(out)

    # correctness check against the plain-JAX reference
    ref = fir_same_ref(waveform.astype(jnp.float32), drop_filter)
    assert out.shape == (T,) and out.dtype == jnp.float32
    np.testing.assert_allclose(np.asarray(out), np.asarray(ref),
                               rtol=1e-4, atol=1e-4)
    print("KERNEL_OK")
</pallas_src>

<mosaic_0001>
module attributes {stable_mosaic.version = 11 : i64} {
  func.func @_fir_matmul_kernel(%arg0: i32, %arg1: memref<32x384xf32, #tpu.memory_space<vmem>>, %arg2: memref<384x256xf32, #tpu.memory_space<vmem>>, %arg3: memref<32x256xf32, #tpu.memory_space<vmem>>) attributes {dimension_semantics = [#tpu.dimension_semantics<parallel>], iteration_bounds = array<i64: 2>, scalar_prefetch = 0 : i64, scratch_operands = 0 : i64, tpu.core_type = #tpu.core_type<tc>, window_params = [{transform_indices = @transform_0, window_bounds = array<i64: 32, 384>}, {pipeline_mode = #tpu.pipeline_mode<synchronous>, transform_indices = @transform_1, window_bounds = array<i64: 384, 256>}, {transform_indices = @transform_2, window_bounds = array<i64: 32, 256>}]} {
    %c0 = arith.constant 0 : index
    %c0_0 = arith.constant 0 : index
    %0 = vector.load %arg1[%c0, %c0_0] : memref<32x384xf32, #tpu.memory_space<vmem>>, vector<32x384xf32>
    %c0_1 = arith.constant 0 : index
    %c0_2 = arith.constant 0 : index
    %1 = vector.load %arg2[%c0_1, %c0_2] : memref<384x256xf32, #tpu.memory_space<vmem>>, vector<384x256xf32>
    %cst = arith.constant dense<0.000000e+00> : vector<32x256xf32>
    %2 = tpu.matmul %0, %1, %cst {dimension_numbers = #tpu.dot_dimension_numbers<[1], [0], [0], [1], [0, 0, 1, 1], [], []>, precision = #tpu.contract_precision<fp32>} : vector<32x384xf32>, vector<384x256xf32>, vector<32x256xf32> -> vector<32x256xf32>
    %c0_3 = arith.constant 0 : index
    %c0_4 = arith.constant 0 : index
    %3 = vector.load %arg3[%c0_3, %c0_4] : memref<32x256xf32, #tpu.memory_space<vmem>>, vector<32x256xf32>
    tpu.vector_store %arg3[%c0_3, %c0_4], %2 {strides = array<i32>} : memref<32x256xf32, #tpu.memory_space<vmem>>, vector<32x256xf32>,
    return
  }
  func.func @transform_0(%arg0: i32) -> (i32, i32) {
    %c0_i32 = arith.constant 0 : i32
    %c0_i32_0 = arith.constant 0 : i32
    return %arg0, %c0_i32 : i32, i32
  }
  func.func @transform_1(%arg0: i32) -> (i32, i32) {
    %c0_i32 = arith.constant 0 : i32
    %c0_i32_0 = arith.constant 0 : i32
    %c0_i32_1 = arith.constant 0 : i32
    return %c0_i32, %c0_i32_0 : i32, i32
  }
  func.func @transform_2(%arg0: i32) -> (i32, i32) {
    %c0_i32 = arith.constant 0 : i32
    %c0_i32_0 = arith.constant 0 : i32
    return %arg0, %c0_i32 : i32, i32
  }
}

</mosaic_0001>

<llo_original>
// kernel: drop_freq_forward.3
$region0: #{drop_freq_forward.3}
  #allocation0 [shape = 'u32[]', space=smem, size = 0x4, offset = 0x4, fixed_abs, tag = 'smem constant byte address 0x4 - core index']
  #allocation1 [shape = 'u32[144,128]{1,0:T(1,128)}', space=vmem, size = 0x12000, scoped, tag = 'internal scratch']
  %s0 = inlined_call_operand.vmem [shape: f32[64,384], index: 0, kind: input, shape index: {}]
  %s1 = inlined_call_operand.vmem [shape: f32[384,256], index: 1, kind: input, shape index: {}]
  %s2 = inlined_call_operand.vmem [shape: f32[64,256], index: 2, kind: output, shape index: {}]
  %s3 = sld [smem:[#allocation0]]
  $region41: #{drop_freq_forward.3} parent=0
    _
  %s5 = ssub.s32 1, %s3
  %s6 = scalar_select 0, %s5, %s3
  loop: start=0, step=1, limit=4
  $region2: #{drop_freq_forward.3} parent=0 // loop_pre_header
    _
  $region3: #{drop_freq_forward.3} parent=0 // loop_header
    %s8 = sphi 0, %s12
    %p9 = scmp.ge.s32.totalorder %s8, 4
    %s18 = sphi 0, %s20
    %s21 = sphi 0, %s18
    %s22 = sphi 0, %s21
    %s38 = sphi 0, %s22
    %s42 = sphi 0, %s42
    %s44 = sphi 0, %s42
    %s45 = sphi 0, %s44
    %s59 = sphi 0, %s45
    %s65 = sphi 0, %s67
    %s68 = sphi 0, %s65
    %s69 = sphi 0, %s68
    %s85 = sphi 0, %s69
  $region4: #{drop_freq_forward.3} parent=0 // loop_header_branch
    %11 = sbr.rel (%p9) target = $region8
  $region5: #{drop_freq_forward.3} parent=0 // loop_body
    %s13 = ssub.s32 %s8, 1
    %s14 = ssub.s32 %s8, 2
    %s15 = sadd.s32 %s8, 1
    %s16 = ssub.s32 %s8, %s15
    %p17 = scmp.eq.s32.totalorder %s16, 0
    %s19 = sadd.s32 %s18, 1
    %s20 = scalar_select %p17, %s18, %s19
    %p23 = pneg %p17
    %p24 = scmp.eq.s32.totalorder %s8, 1
    %p25 = por %p23, %p24
    %p26 = scmp.ne.s32.totalorder %s18, %s21
    %p27 = scmp.eq.s32.totalorder %s8, 0
    %p28 = por %p26, %p27
    %p29 = scmp.ne.s32.totalorder %s18, %s21
    %p30 = scmp.eq.s32.totalorder %s13, 1
    %p31 = por %p29, %p30
    %p32 = scmp.ne.s32.totalorder %s21, %s22
    %p33 = scmp.eq.s32.totalorder %s13, 0
    %p34 = por %p32, %p33
    %p35 = scmp.ne.s32.totalorder %s21, %s22
    %p36 = scmp.eq.s32.totalorder %s14, 1
    %p37 = por %p35, %p36
    %p39 = scmp.ne.s32.totalorder %s22, %s38
    %p40 = scmp.eq.s32.totalorder %s14, 0
    %p41 = por %p39, %p40
    %s43 = sadd.s32 %s42, 1
    %p46 = scmp.eq.s32.totalorder %s8, 1
    %p47 = scmp.ne.s32.totalorder %s42, %s44
    %p48 = scmp.eq.s32.totalorder %s8, 0
    %p49 = por %p47, %p48
    %p50 = scmp.ne.s32.totalorder %s42, %s44
    %p51 = scmp.eq.s32.totalorder %s13, 1
    %p52 = por %p50, %p51
    %p53 = scmp.ne.s32.totalorder %s44, %s45
    %p54 = scmp.eq.s32.totalorder %s13, 0
    %p55 = por %p53, %p54
    %p56 = scmp.ne.s32.totalorder %s44, %s45
    %p57 = scmp.eq.s32.totalorder %s14, 1
    %p58 = por %p56, %p57
    %p60 = scmp.ne.s32.totalorder %s45, %s59
    %p61 = scmp.eq.s32.totalorder %s14, 0
    %p62 = por %p60, %p61
    %s63 = ssub.s32 %s8, %s15
    %p64 = scmp.eq.s32.totalorder %s63, 0
    %s66 = sadd.s32 %s65, 1
    %s67 = scalar_select %p64, %s65, %s66
    %p70 = pneg %p64
    %p71 = scmp.eq.s32.totalorder %s8, 1
    %p72 = por %p70, %p71
    %p73 = scmp.ne.s32.totalorder %s65, %s68
    %p74 = scmp.eq.s32.totalorder %s8, 0
    %p75 = por %p73, %p74
    %p76 = scmp.ne.s32.totalorder %s65, %s68
    %p77 = scmp.eq.s32.totalorder %s13, 1
    %p78 = por %p76, %p77
    %p79 = scmp.ne.s32.totalorder %s68, %s69
    %p80 = scmp.eq.s32.totalorder %s13, 0
    %p81 = por %p79, %p80
    %p82 = scmp.ne.s32.totalorder %s68, %s69
    %p83 = scmp.eq.s32.totalorder %s14, 1
    %p84 = por %p82, %p83
    %p86 = scmp.ne.s32.totalorder %s69, %s85
    %p87 = scmp.eq.s32.totalorder %s14, 0
    %p88 = por %p86, %p87
    %p89 = scmp.le.s32.totalorder 1, %s8
    %p90 = scmp.lt.s32.totalorder %s8, 3
    %p91 = pnand %p89, %p90
    %p92 = pneg %p91
    // Predicated region
    $region9: #{drop_freq_forward.3} parent=5 // pred_check
      _
    $region10: #{drop_freq_forward.3} parent=5 // pred_check_branch
      %94 = sbr.rel (%p91) target = $region12
    $region11: #{drop_freq_forward.3} parent=5 // pred_region
      %s95 = ssub.s32 %s8, 1
      // Predicated region
      $region13: #{drop_freq_forward.3} parent=11 // pred_check
        %p96 = pneg %p55
      $region14: #{drop_freq_forward.3} parent=11 // pred_check_branch
        %98 = sbr.rel (%p96) target = $region16
      $region15: #{drop_freq_forward.3} parent=11 // pred_region
        _
      $region16: #{drop_freq_forward.3} parent=11 // pred_fallthru
        _
    $region12: #{drop_freq_forward.3} parent=5 // pred_fallthru
      _
    %p99 = scmp.lt.s32.totalorder %s8, 2
    // Predicated region
    $region17: #{drop_freq_forward.3} parent=5 // pred_check
      %p100 = pneg %p99
    $region18: #{drop_freq_forward.3} parent=5 // pred_check_branch
      %102 = sbr.rel (%p100) target = $region20
    $region19: #{drop_freq_forward.3} parent=5 // pred_region
      // Predicated region
      $region21: #{drop_freq_forward.3} parent=19 // pred_check
        %p103 = pneg %p28
      $region22: #{drop_freq_forward.3} parent=19 // pred_check_branch
        %105 = sbr.rel (%p103) target = $region24
      $region23: #{drop_freq_forward.3} parent=19 // pred_region
        %s106 = smul.u32 4, %s8
        %p107 = scmp.lt.s32.totalorder %s106, 7
        %s108 = scalar_select %p107, %s106, 7
        %s109 = smul.addr %s108, 3
        %s110 = smul.addr %s109, 8
        %s111 = scalar_lea.vmem %s0, %s110
        %s112 = smul.u32 4, %s8
      $region24: #{drop_freq_forward.3} parent=19 // pred_fallthru
        _
    $region20: #{drop_freq_forward.3} parent=5 // pred_fallthru
      _
    %p113 = scmp.le.s32.totalorder 1, %s8
    %p114 = scmp.lt.s32.totalorder %s8, 3
    %p115 = pnand %p113, %p114
    %p116 = pneg %p115
    // Predicated region
    $region25: #{drop_freq_forward.3} parent=5 // pred_check
      _
    $region26: #{drop_freq_forward.3} parent=5 // pred_check_branch
      %118 = sbr.rel (%p115) target = $region28
    $region27: #{drop_freq_forward.3} parent=5 // pred_region
      %s119 = ssub.s32 %s8, 1
      %s120 = smul.u32 4, %s13
      %p121 = scmp.lt.s32.totalorder %s120, 7
      %s122 = scalar_select %p121, %s120, 7
      %s123 = smul.addr %s122, 3
      %s124 = smul.addr %s123, 8
      %s125 = scalar_lea.vmem %s0, %s124
      %p126 = pneg %p34
      %p127 = pneg %p31
      %p128 = pneg %p55
      %p129 = pneg %p52
      %p130 = pneg %p81
      %p131 = pneg %p78
      %s132 = smul.u32 4, %s13
      %p133 = scmp.lt.s32.totalorder %s132, 7
      %s134 = scalar_select %p133, %s132, 7
      %s135 = smul.addr %s134, 2
      %s136 = smul.addr %s135, 8
      %s137 = scalar_lea.vmem %s2, %s136
      %s138 = smul.u32 4, %s13
      %p139 = scmp.lt.s32.totalorder %s138, 7
      %s140 = scalar_select %p139, %s138, 7
      %s141 = smul.addr %s140, 3
      %s142 = smul.addr %s141, 8
      %s143 = scalar_lea.vmem %s0, %s142
      %s144 = smul.u32 4, %s13
      %s145 = smul.u32 4, %s13
      %p146 = scmp.lt.s32.totalorder %s145, 7
      %s147 = scalar_select %p146, %s145, 7
      %s148 = smul.addr %s147, 2
      %s149 = smul.addr %s148, 8
      %s150 = scalar_lea.vmem %s2, %s149
      %s151 = smul.u32 4, %s13
      %v152 = vld [vmem:[%s143] sm:$0xff]
      %v153 = vld [vmem:[%s143 + $0x8] sm:$0xff]
      %v154 = vld [vmem:[%s143 + $0x10] sm:$0xff]
      %v155 = vld [vmem:[%s143 + $0x18] sm:$0xff]
      %v156 = vld [vmem:[%s143 + $0x20] sm:$0xff]
      %v157 = vld [vmem:[%s143 + $0x28] sm:$0xff]
      %v158 = vld [vmem:[%s143 + $0x30] sm:$0xff]
      %v159 = vld [vmem:[%s143 + $0x38] sm:$0xff]
      %v160 = vld [vmem:[%s143 + $0x40] sm:$0xff]
      %v161 = vld [vmem:[%s143 + $0x48] sm:$0xff]
      %v162 = vld [vmem:[%s143 + $0x50] sm:$0xff]
      %v163 = vld [vmem:[%s143 + $0x58] sm:$0xff]
      %v164 = vld [vmem:[%s1] sm:$0xff]
      %v165 = vld [vmem:[%s1 + $0x8] sm:$0xff]
      %v166 = vld [vmem:[%s1 + $0x10] sm:$0xff]
      %v167 = vld [vmem:[%s1 + $0x18] sm:$0xff]
      %v168 = vld [vmem:[%s1 + $0x20] sm:$0xff]
      %v169 = vld [vmem:[%s1 + $0x28] sm:$0xff]
      %v170 = vld [vmem:[%s1 + $0x30] sm:$0xff]
      %v171 = vld [vmem:[%s1 + $0x38] sm:$0xff]
      %v172 = vld [vmem:[%s1 + $0x40] sm:$0xff]
      %v173 = vld [vmem:[%s1 + $0x48] sm:$0xff]
      %v174 = vld [vmem:[%s1 + $0x50] sm:$0xff]
      %v175 = vld [vmem:[%s1 + $0x58] sm:$0xff]
      %v176 = vld [vmem:[%s1 + $0x60] sm:$0xff]
      %v177 = vld [vmem:[%s1 + $0x68] sm:$0xff]
      %v178 = vld [vmem:[%s1 + $0x70] sm:$0xff]
      %v179 = vld [vmem:[%s1 + $0x78] sm:$0xff]
      %v180 = vld [vmem:[%s1 + $0x80] sm:$0xff]
      %v181 = vld [vmem:[%s1 + $0x88] sm:$0xff]
      %v182 = vld [vmem:[%s1 + $0x90] sm:$0xff]
      %v183 = vld [vmem:[%s1 + $0x98] sm:$0xff]
      %v184 = vld [vmem:[%s1 + $0xa0] sm:$0xff]
      %v185 = vld [vmem:[%s1 + $0xa8] sm:$0xff]
      %v186 = vld [vmem:[%s1 + $0xb0] sm:$0xff]
      %v187 = vld [vmem:[%s1 + $0xb8] sm:$0xff]
      %v188 = vld [vmem:[%s1 + $0xc0] sm:$0xff]
      %v189 = vld [vmem:[%s1 + $0xc8] sm:$0xff]
      %v190 = vld [vmem:[%s1 + $0xd0] sm:$0xff]
      %v191 = vld [vmem:[%s1 + $0xd8] sm:$0xff]
      %v192 = vld [vmem:[%s1 + $0xe0] sm:$0xff]
      %v193 = vld [vmem:[%s1 + $0xe8] sm:$0xff]
      %v194 = vld [vmem:[%s1 + $0xf0] sm:$0xff]
      %v195 = vld [vmem:[%s1 + $0xf8] sm:$0xff]
      %v196 = vld [vmem:[%s1 + $0x100] sm:$0xff]
      %v197 = vld [vmem:[%s1 + $0x108] sm:$0xff]
      %v198 = vld [vmem:[%s1 + $0x110] sm:$0xff]
      %v199 = vld [vmem:[%s1 + $0x118] sm:$0xff]
      %v200 = vld [vmem:[%s1 + $0x120] sm:$0xff]
      %v201 = vld [vmem:[%s1 + $0x128] sm:$0xff]
      %v202 = vld [vmem:[%s1 + $0x130] sm:$0xff]
      %v203 = vld [vmem:[%s1 + $0x138] sm:$0xff]
      %v204 = vld [vmem:[%s1 + $0x140] sm:$0xff]
      %v205 = vld [vmem:[%s1 + $0x148] sm:$0xff]
      %v206 = vld [vmem:[%s1 + $0x150] sm:$0xff]
      %v207 = vld [vmem:[%s1 + $0x158] sm:$0xff]
      %v208 = vld [vmem:[%s1 + $0x160] sm:$0xff]
      %v209 = vld [vmem:[%s1 + $0x168] sm:$0xff]
      %v210 = vld [vmem:[%s1 + $0x170] sm:$0xff]
      %v211 = vld [vmem:[%s1 + $0x178] sm:$0xff]
      %v212 = vld [vmem:[%s1 + $0x180] sm:$0xff]
      %v213 = vld [vmem:[%s1 + $0x188] sm:$0xff]
      %v214 = vld [vmem:[%s1 + $0x190] sm:$0xff]
      %v215 = vld [vmem:[%s1 + $0x198] sm:$0xff]
      %v216 = vld [vmem:[%s1 + $0x1a0] sm:$0xff]
      %v217 = vld [vmem:[%s1 + $0x1a8] sm:$0xff]
      %v218 = vld [vmem:[%s1 + $0x1b0] sm:$0xff]
      %v219 = vld [vmem:[%s1 + $0x1b8] sm:$0xff]
      %v220 = vld [vmem:[%s1 + $0x1c0] sm:$0xff]
      %v221 = vld [vmem:[%s1 + $0x1c8] sm:$0xff]
      %v222 = vld [vmem:[%s1 + $0x1d0] sm:$0xff]
      %v223 = vld [vmem:[%s1 + $0x1d8] sm:$0xff]
      %v224 = vld [vmem:[%s1 + $0x1e0] sm:$0xff]
      %v225 = vld [vmem:[%s1 + $0x1e8] sm:$0xff]
      %v226 = vld [vmem:[%s1 + $0x1f0] sm:$0xff]
      %v227 = vld [vmem:[%s1 + $0x1f8] sm:$0xff]
      %v228 = vld [vmem:[%s1 + $0x200] sm:$0xff]
      %v229 = vld [vmem:[%s1 + $0x208] sm:$0xff]
      %v230 = vld [vmem:[%s1 + $0x210] sm:$0xff]
      %v231 = vld [vmem:[%s1 + $0x218] sm:$0xff]
      %v232 = vld [vmem:[%s1 + $0x220] sm:$0xff]
      %v233 = vld [vmem:[%s1 + $0x228] sm:$0xff]
      %v234 = vld [vmem:[%s1 + $0x230] sm:$0xff]
      %v235 = vld [vmem:[%s1 + $0x238] sm:$0xff]
      %v236 = vld [vmem:[%s1 + $0x240] sm:$0xff]
      %v237 = vld [vmem:[%s1 + $0x248] sm:$0xff]
      %v238 = vld [vmem:[%s1 + $0x250] sm:$0xff]
      %v239 = vld [vmem:[%s1 + $0x258] sm:$0xff]
      %v240 = vld [vmem:[%s1 + $0x260] sm:$0xff]
      %v241 = vld [vmem:[%s1 + $0x268] sm:$0xff]
      %v242 = vld [vmem:[%s1 + $0x270] sm:$0xff]
      %v243 = vld [vmem:[%s1 + $0x278] sm:$0xff]
      %v244 = vld [vmem:[%s1 + $0x280] sm:$0xff]
      %v245 = vld [vmem:[%s1 + $0x288] sm:$0xff]
      %v246 = vld [vmem:[%s1 + $0x290] sm:$0xff]
      %v247 = vld [vmem:[%s1 + $0x298] sm:$0xff]
      %v248 = vld [vmem:[%s1 + $0x2a0] sm:$0xff]
      %v249 = vld [vmem:[%s1 + $0x2a8] sm:$0xff]
      %v250 = vld [vmem:[%s1 + $0x2b0] sm:$0xff]
      %v251 = vld [vmem:[%s1 + $0x2b8] sm:$0xff]
      %v252 = vld [vmem:[%s1 + $0x2c0] sm:$0xff]
      %v253 = vld [vmem:[%s1 + $0x2c8] sm:$0xff]
      %v254 = vld [vmem:[%s1 + $0x2d0] sm:$0xff]
      %v255 = vld [vmem:[%s1 + $0x2d8] sm:$0xff]
      %v256 = vld [vmem:[%s1 + $0x2e0] sm:$0xff]
      %v257 = vld [vmem:[%s1 + $0x2e8] sm:$0xff]
      %v258 = vld [vmem:[%s1 + $0x2f0] sm:$0xff]
      %v259 = vld [vmem:[%s1 + $0x2f8] sm:$0xff]
      %v260 = vand.u32 %v165, 4294901760
      %261 = vmatprep.subr.mxu0 %v260
      %v262 = vand.u32 %v164, 4294901760
      %263 = vmatpush1.msra.mxu0 %v262
      %v264 = vand.u32 %v167, 4294901760
      %265 = vmatprep.subr.mxu0 %v264
      %v266 = vand.u32 %v166, 4294901760
      %267 = vmatpush1.msra.mxu0 %v266
      %v268 = vand.u32 %v169, 4294901760
      %269 = vmatprep.subr.mxu0 %v268
      %v270 = vand.u32 %v168, 4294901760
      %271 = vmatpush1.msra.mxu0 %v270
      %v272 = vand.u32 %v171, 4294901760
      %273 = vmatprep.subr.mxu0 %v272
      %v274 = vand.u32 %v170, 4294901760
      %275 = vmatpush1.msra.mxu0 %v274
      %v276 = vand.u32 %v173, 4294901760
      %277 = vmatprep.subr.mxu0 %v276
      %v278 = vand.u32 %v172, 4294901760
      %279 = vmatpush1.msra.mxu0 %v278
      %v280 = vand.u32 %v175, 4294901760
      %281 = vmatprep.subr.mxu0 %v280
      %v282 = vand.u32 %v174, 4294901760
      %283 = vmatpush1.msra.mxu0 %v282
      %v284 = vand.u32 %v177, 4294901760
      %285 = vmatprep.subr.mxu0 %v284
      %v286 = vand.u32 %v176, 4294901760
      %287 = vmatpush1.msra.mxu0 %v286
      %v288 = vand.u32 %v179, 4294901760
      %289 = vmatprep.subr.mxu0 %v288
      %v290 = vand.u32 %v178, 4294901760
      %291 = vmatpush1.msra.mxu0 %v290
      %v292 = vand.u32 %v181, 4294901760
      %293 = vmatprep.subr.mxu0 %v292
      %v294 = vand.u32 %v180, 4294901760
      %295 = vmatpush1.msra.mxu0 %v294
      %v296 = vand.u32 %v183, 4294901760
      %297 = vmatprep.subr.mxu0 %v296
      %v298 = vand.u32 %v182, 4294901760
      %299 = vmatpush1.msra.mxu0 %v298
      %v300 = vand.u32 %v185, 4294901760
      %301 = vmatprep.subr.mxu0 %v300
      %v302 = vand.u32 %v184, 4294901760
      %303 = vmatpush1.msra.mxu0 %v302
      %v304 = vand.u32 %v187, 4294901760
      %305 = vmatprep.subr.mxu0 %v304
      %v306 = vand.u32 %v186, 4294901760
      %307 = vmatpush1.msra.mxu0 %v306
      %v308 = vand.u32 %v189, 4294901760
      %309 = vmatprep.subr.mxu0 %v308
      %v310 = vand.u32 %v188, 4294901760
      %311 = vmatpush1.msra.mxu0 %v310
      %v312 = vand.u32 %v191, 4294901760
      %313 = vmatprep.subr.mxu0 %v312
      %v314 = vand.u32 %v190, 4294901760
      %315 = vmatpush1.msra.mxu0 %v314
      %v316 = vand.u32 %v193, 4294901760
      %317 = vmatprep.subr.mxu0 %v316
      %v318 = vand.u32 %v192, 4294901760
      %319 = vmatpush1.msra.mxu0 %v318
      %v320 = vand.u32 %v195, 4294901760
      %321 = vmatprep.subr.mxu0 %v320
      %v322 = vand.u32 %v194, 4294901760
      %323 = vmatpush1.msra.mxu0 %v322
      %v324 = vand.u32 %v197, 4294901760
      %325 = vmatprep.subr.mxu0 %v324
      %v326 = vand.u32 %v196, 4294901760
      %327 = vmatpush1.msra.mxu0 %v326
      %v328 = vand.u32 %v199, 4294901760
      %329 = vmatprep.subr.mxu0 %v328
      %v330 = vand.u32 %v198, 4294901760
      %331 = vmatpush1.msra.mxu0 %v330
      %v332 = vand.u32 %v201, 4294901760
      %333 = vmatprep.subr.mxu0 %v332
      %v334 = vand.u32 %v200, 4294901760
      %335 = vmatpush1.msra.mxu0 %v334
      %v336 = vand.u32 %v203, 4294901760
      %337 = vmatprep.subr.mxu0 %v336
      %v338 = vand.u32 %v202, 4294901760
      %339 = vmatpush1.msra.mxu0 %v338
      %v340 = vand.u32 %v205, 4294901760
      %341 = vmatprep.subr.mxu0 %v340
      %v342 = vand.u32 %v204, 4294901760
      %343 = vmatpush1.msra.mxu0 %v342
      %v344 = vand.u32 %v207, 4294901760
      %345 = vmatprep.subr.mxu0 %v344
      %v346 = vand.u32 %v206, 4294901760
      %347 = vmatpush1.msra.mxu0 %v346
      %v348 = vand.u32 %v209, 4294901760
      %349 = vmatprep.subr.mxu0 %v348
      %v350 = vand.u32 %v208, 4294901760
      %351 = vmatpush1.msra.mxu0 %v350
      %v352 = vand.u32 %v211, 4294901760
      %353 = vmatprep.subr.mxu0 %v352
      %v354 = vand.u32 %v210, 4294901760
      %355 = vmatpush1.msra.mxu0 %v354
      %v356 = vand.u32 %v213, 4294901760
      %357 = vmatprep.subr.mxu0 %v356
      %v358 = vand.u32 %v212, 4294901760
      %359 = vmatpush1.msra.mxu0 %v358
      %v360 = vand.u32 %v215, 4294901760
      %361 = vmatprep.subr.mxu0 %v360
      %v362 = vand.u32 %v214, 4294901760
      %363 = vmatpush1.msra.mxu0 %v362
      %v364 = vand.u32 %v217, 4294901760
      %365 = vmatprep.subr.mxu0 %v364
      %v366 = vand.u32 %v216, 4294901760
      %367 = vmatpush1.msra.mxu0 %v366
      %v368 = vand.u32 %v219, 4294901760
      %369 = vmatprep.subr.mxu0 %v368
      %v370 = vand.u32 %v218, 4294901760
      %371 = vmatpush1.msra.mxu0 %v370
      %v372 = vand.u32 %v221, 4294901760
      %373 = vmatprep.subr.mxu0 %v372
      %v374 = vand.u32 %v220, 4294901760
      %375 = vmatpush1.msra.mxu0 %v374
      %v376 = vand.u32 %v223, 4294901760
      %377 = vmatprep.subr.mxu0 %v376
      %v378 = vand.u32 %v222, 4294901760
      %379 = vmatpush1.msra.mxu0 %v378
      %v380 = vand.u32 %v225, 4294901760
      %381 = vmatprep.subr.mxu0 %v380
      %v382 = vand.u32 %v224, 4294901760
      %383 = vmatpush1.msra.mxu0 %v382
      %v384 = vand.u32 %v227, 4294901760
      %385 = vmatprep.subr.mxu0 %v384
      %v386 = vand.u32 %v226, 4294901760
      %387 = vmatpush1.msra.mxu0 %v386
      %v388 = vand.u32 %v153, 4294901760
      %v389 = vsub.f32 %v153, %v388
      %v390 = vand.u32 %v389, 4294901760
      %v391 = vsub.f32 %v389, %v390
      %v392 = vand.u32 %v391, 4294901760
      %393 = vmatprep.mubr.f32.mxu0 %v392
      %v394 = vand.u32 %v152, 4294901760
      %v395 = vsub.f32 %v152, %v394
      %v396 = vand.u32 %v395, 4294901760
      %v397 = vsub.f32 %v395, %v396
      %v398 = vand.u32 %v397, 4294901760
      %399 = vmatmul.mubr.f32.gmra.mrb[0].mxu0 %v398
      %v400 = vpop.f32.mrb[0].mxu0
      %v401 = vadd.f32 0.0, %v400
      %v402 = vpop.f32.mrb[0].mxu0
      %v403 = vadd.f32 0.0, %v402
      %v404 = vand.u32 %v156, 4294901760
      %v405 = vsub.f32 %v156, %v404
      %v406 = vand.u32 %v405, 4294901760
      %v407 = vsub.f32 %v405, %v406
      %v408 = vand.u32 %v407, 4294901760
      %409 = vmatprep.mubr.f32.mxu0 %v408
      %v410 = vand.u32 %v155, 4294901760
      %v411 = vsub.f32 %v155, %v410
      %v412 = vand.u32 %v411, 4294901760
      %v413 = vsub.f32 %v411, %v412
      %v414 = vand.u32 %v413, 4294901760
      %415 = vmatmul.mubr.f32.gmra.mrb[0].mxu0 %v414
      %v416 = vpop.f32.mrb[0].mxu0
      %v417 = vadd.f32 0.0, %v416
      %v418 = vpop.f32.mrb[0].mxu0
      %v419 = vadd.f32 0.0, %v418
      %v420 = vand.u32 %v159, 4294901760
      %v421 = vsub.f32 %v159, %v420
      %v422 = vand.u32 %v421, 4294901760
      %v423 = vsub.f32 %v421, %v422
      %v424 = vand.u32 %v423, 4294901760
      %425 = vmatprep.mubr.f32.mxu0 %v424
      %v426 = vand.u32 %v158, 4294901760
      %v427 = vsub.f32 %v158, %v426
      %v428 = vand.u32 %v427, 4294901760
      %v429 = vsub.f32 %v427, %v428
      %v430 = vand.u32 %v429, 4294901760
      %431 = vmatmul.mubr.f32.gmra.mrb[0].mxu0 %v430
      %v432 = vpop.f32.mrb[0].mxu0
      %v433 = vadd.f32 0.0, %v432
      %v434 = vpop.f32.mrb[0].mxu0
      %v435 = vadd.f32 0.0, %v434
      %v436 = vand.u32 %v162, 4294901760
      %v437 = vsub.f32 %v162, %v436
      %v438 = vand.u32 %v437, 4294901760
      %v439 = vsub.f32 %v437, %v438
      %v440 = vand.u32 %v439, 4294901760
      %441 = vmatprep.mubr.f32.mxu0 %v440
      %v442 = vand.u32 %v161, 4294901760
      %v443 = vsub.f32 %v161, %v442
      %v444 = vand.u32 %v443, 4294901760
      %v445 = vsub.f32 %v443, %v444
      %v446 = vand.u32 %v445, 4294901760
      %447 = vmatmul.mubr.f32.gmra.mrb[0].mxu0 %v446
      %v448 = vpop.f32.mrb[0].mxu0
      %v449 = vadd.f32 0.0, %v448
      %v450 = vpop.f32.mrb[0].mxu0
      %v451 = vadd.f32 0.0, %v450
      %452 = vdwg.mxu0
      %v453 = vand.u32 %v165, 4294901760
      %v454 = vsub.f32 %v165, %v453
      %v455 = vand.u32 %v454, 4294901760
      %v456 = vsub.f32 %v454, %v455
      %v457 = vand.u32 %v456, 4294901760
      %458 = vmatprep.subr.mxu0 %v457
      %v459 = vand.u32 %v164, 4294901760
      %v460 = vsub.f32 %v164, %v459
      %v461 = vand.u32 %v460, 4294901760
      %v462 = vsub.f32 %v460, %v461
      %v463 = vand.u32 %v462, 4294901760
      %464 = vmatpush1.msra.mxu0 %v463
      %v465 = vand.u32 %v167, 4294901760
      %v466 = vsub.f32 %v167, %v465
      %v467 = vand.u32 %v466, 4294901760
      %v468 = vsub.f32 %v466, %v467
      %v469 = vand.u32 %v468, 4294901760
      %470 = vmatprep.subr.mxu0 %v469
      %v471 = vand.u32 %v166, 4294901760
      %v472 = vsub.f32 %v166, %v471
      %v473 = vand.u32 %v472, 4294901760
      %v474 = vsub.f32 %v472, %v473
      %v475 = vand.u32 %v474, 4294901760
      %476 = vmatpush1.msra.mxu0 %v475
      %v477 = vand.u32 %v169, 4294901760
      %v478 = vsub.f32 %v169, %v477
      %v479 = vand.u32 %v478, 4294901760
      %v480 = vsub.f32 %v478, %v479
      %v481 = vand.u32 %v480, 4294901760
      %482 = vmatprep.subr.mxu0 %v481
      %v483 = vand.u32 %v168, 4294901760
      %v484 = vsub.f32 %v168, %v483
      %v485 = vand.u32 %v484, 4294901760
      %v486 = vsub.f32 %v484, %v485
      %v487 = vand.u32 %v486, 4294901760
      %488 = vmatpush1.msra.mxu0 %v487
      %v489 = vand.u32 %v171, 4294901760
      %v490 = vsub.f32 %v171, %v489
      %v491 = vand.u32 %v490, 4294901760
      %v492 = vsub.f32 %v490, %v491
      %v493 = vand.u32 %v492, 4294901760
      %494 = vmatprep.subr.mxu0 %v493
      %v495 = vand.u32 %v170, 4294901760
      %v496 = vsub.f32 %v170, %v495
      %v497 = vand.u32 %v496, 4294901760
      %v498 = vsub.f32 %v496, %v497
      %v499 = vand.u32 %v498, 4294901760
      %500 = vmatpush1.msra.mxu0 %v499
      %v501 = vand.u32 %v173, 4294901760
      %v502 = vsub.f32 %v173, %v501
      %v503 = vand.u32 %v502, 4294901760
      %v504 = vsub.f32 %v502, %v503
      %v505 = vand.u32 %v504, 4294901760
      %506 = vmatprep.subr.mxu0 %v505
      %v507 = vand.u32 %v172, 4294901760
      %v508 = vsub.f32 %v172, %v507
      %v509 = vand.u32 %v508, 4294901760
      %v510 = vsub.f32 %v508, %v509
      %v511 = vand.u32 %v510, 4294901760
      %512 = vmatpush1.msra.mxu0 %v511
      %v513 = vand.u32 %v175, 4294901760
      %v514 = vsub.f32 %v175, %v513
      %v515 = vand.u32 %v514, 4294901760
      %v516 = vsub.f32 %v514, %v515
      %v517 = vand.u32 %v516, 4294901760
      %518 = vmatprep.subr.mxu0 %v517
      %v519 = vand.u32 %v174, 4294901760
      %v520 = vsub.f32 %v174, %v519
      %v521 = vand.u32 %v520, 4294901760
      %v522 = vsub.f32 %v520, %v521
      %v523 = vand.u32 %v522, 4294901760
      %524 = vmatpush1.msra.mxu0 %v523
      %v525 = vand.u32 %v177, 4294901760
      %v526 = vsub.f32 %v177, %v525
      %v527 = vand.u32 %v526, 4294901760
      %v528 = vsub.f32 %v526, %v527
      %v529 = vand.u32 %v528, 4294901760
      %530 = vmatprep.subr.mxu0 %v529
      %v531 = vand.u32 %v176, 4294901760
      %v532 = vsub.f32 %v176, %v531
      %v533 = vand.u32 %v532, 4294901760
      %v534 = vsub.f32 %v532, %v533
      %v535 = vand.u32 %v534, 4294901760
      %536 = vmatpush1.msra.mxu0 %v535
      %v537 = vand.u32 %v179, 4294901760
      %v538 = vsub.f32 %v179, %v537
      %v539 = vand.u32 %v538, 4294901760
      %v540 = vsub.f32 %v538, %v539
      %v541 = vand.u32 %v540, 4294901760
      %542 = vmatprep.subr.mxu0 %v541
      %v543 = vand.u32 %v178, 4294901760
      %v544 = vsub.f32 %v178, %v543
      %v545 = vand.u32 %v544, 4294901760
      %v546 = vsub.f32 %v544, %v545
      %v547 = vand.u32 %v546, 4294901760
      %548 = vmatpush1.msra.mxu0 %v547
      %v549 = vand.u32 %v181, 4294901760
      %v550 = vsub.f32 %v181, %v549
      %v551 = vand.u32 %v550, 4294901760
      %v552 = vsub.f32 %v550, %v551
      %v553 = vand.u32 %v552, 4294901760
      %554 = vmatprep.subr.mxu0 %v553
      %v555 = vand.u32 %v180, 4294901760
      %v556 = vsub.f32 %v180, %v555
      %v557 = vand.u32 %v556, 4294901760
      %v558 = vsub.f32 %v556, %v557
      %v559 = vand.u32 %v558, 4294901760
      %560 = vmatpush1.msra.mxu0 %v559
      %v561 = vand.u32 %v183, 4294901760
      %v562 = vsub.f32 %v183, %v561
      %v563 = vand.u32 %v562, 4294901760
      %v564 = vsub.f32 %v562, %v563
      %v565 = vand.u32 %v564, 4294901760
      %566 = vmatprep.subr.mxu0 %v565
      %v567 = vand.u32 %v182, 4294901760
      %v568 = vsub.f32 %v182, %v567
      %v569 = vand.u32 %v568, 4294901760
      %v570 = vsub.f32 %v568, %v569
      %v571 = vand.u32 %v570, 4294901760
      %572 = vmatpush1.msra.mxu0 %v571
      %v573 = vand.u32 %v185, 4294901760
      %v574 = vsub.f32 %v185, %v573
      %v575 = vand.u32 %v574, 4294901760
      %v576 = vsub.f32 %v574, %v575
      %v577 = vand.u32 %v576, 4294901760
      %578 = vmatprep.subr.mxu0 %v577
      %v579 = vand.u32 %v184, 4294901760
      %v580 = vsub.f32 %v184, %v579
      %v581 = vand.u32 %v580, 4294901760
      %v582 = vsub.f32 %v580, %v581
      %v583 = vand.u32 %v582, 4294901760
      %584 = vmatpush1.msra.mxu0 %v583
      %v585 = vand.u32 %v187, 4294901760
      %v586 = vsub.f32 %v187, %v585
      %v587 = vand.u32 %v586, 4294901760
      %v588 = vsub.f32 %v586, %v587
      %v589 = vand.u32 %v588, 4294901760
      %590 = vmatprep.subr.mxu0 %v589
      %v591 = vand.u32 %v186, 4294901760
      %v592 = vsub.f32 %v186, %v591
      %v593 = vand.u32 %v592, 4294901760
      %v594 = vsub.f32 %v592, %v593
      %v595 = vand.u32 %v594, 4294901760
      %596 = vmatpush1.msra.mxu0 %v595
      %v597 = vand.u32 %v189, 4294901760
      %v598 = vsub.f32 %v189, %v597
      %v599 = vand.u32 %v598, 4294901760
      %v600 = vsub.f32 %v598, %v599
      %v601 = vand.u32 %v600, 4294901760
      %602 = vmatprep.subr.mxu0 %v601
      %v603 = vand.u32 %v188, 4294901760
      %v604 = vsub.f32 %v188, %v603
      %v605 = vand.u32 %v604, 4294901760
      %v606 = vsub.f32 %v604, %v605
      %v607 = vand.u32 %v606, 4294901760
      %608 = vmatpush1.msra.mxu0 %v607
      %v609 = vand.u32 %v191, 4294901760
      %v610 = vsub.f32 %v191, %v609
      %v611 = vand.u32 %v610, 4294901760
      %v612 = vsub.f32 %v610, %v611
      %v613 = vand.u32 %v612, 4294901760
      %614 = vmatprep.subr.mxu0 %v613
      %v615 = vand.u32 %v190, 4294901760
      %v616 = vsub.f32 %v190, %v615
      %v617 = vand.u32 %v616, 4294901760
      %v618 = vsub.f32 %v616, %v617
      %v619 = vand.u32 %v618, 4294901760
      %620 = vmatpush1.msra.mxu0 %v619
      %v621 = vand.u32 %v193, 4294901760
      %v622 = vsub.f32 %v193, %v621
      %v623 = vand.u32 %v622, 4294901760
      %v624 = vsub.f32 %v622, %v623
      %v625 = vand.u32 %v624, 4294901760
      %626 = vmatprep.subr.mxu0 %v625
      %v627 = vand.u32 %v192, 4294901760
      %v628 = vsub.f32 %v192, %v627
      %v629 = vand.u32 %v628, 4294901760
      %v630 = vsub.f32 %v628, %v629
      %v631 = vand.u32 %v630, 4294901760
      %632 = vmatpush1.msra.mxu0 %v631
      %v633 = vand.u32 %v195, 4294901760
      %v634 = vsub.f32 %v195, %v633
      %v635 = vand.u32 %v634, 4294901760
      %v636 = vsub.f32 %v634, %v635
      %v637 = vand.u32 %v636, 4294901760
      %638 = vmatprep.subr.mxu0 %v637
      %v639 = vand.u32 %v194, 4294901760
      %v640 = vsub.f32 %v194, %v639
      %v641 = vand.u32 %v640, 4294901760
      %v642 = vsub.f32 %v640, %v641
      %v643 = vand.u32 %v642, 4294901760
      %644 = vmatpush1.msra.mxu0 %v643
      %v645 = vand.u32 %v197, 4294901760
      %v646 = vsub.f32 %v197, %v645
      %v647 = vand.u32 %v646, 4294901760
      %v648 = vsub.f32 %v646, %v647
      %v649 = vand.u32 %v648, 4294901760
      %650 = vmatprep.subr.mxu0 %v649
      %v651 = vand.u32 %v196, 4294901760
      %v652 = vsub.f32 %v196, %v651
      %v653 = vand.u32 %v652, 4294901760
      %v654 = vsub.f32 %v652, %v653
      %v655 = vand.u32 %v654, 4294901760
      %656 = vmatpush1.msra.mxu0 %v655
      %v657 = vand.u32 %v199, 4294901760
      %v658 = vsub.f32 %v199, %v657
      %v659 = vand.u32 %v658, 4294901760
      %v660 = vsub.f32 %v658, %v659
      %v661 = vand.u32 %v660, 4294901760
      %662 = vmatprep.subr.mxu0 %v661
      %v663 = vand.u32 %v198, 4294901760
      %v664 = vsub.f32 %v198, %v663
      %v665 = vand.u32 %v664, 4294901760
      %v666 = vsub.f32 %v664, %v665
      %v667 = vand.u32 %v666, 4294901760
      %668 = vmatpush1.msra.mxu0 %v667
      %v669 = vand.u32 %v201, 4294901760
      %v670 = vsub.f32 %v201, %v669
      %v671 = vand.u32 %v670, 4294901760
      %v672 = vsub.f32 %v670, %v671
      %v673 = vand.u32 %v672, 4294901760
      %674 = vmatprep.subr.mxu0 %v673
      %v675 = vand.u32 %v200, 4294901760
      %v676 = vsub.f32 %v200, %v675
      %v677 = vand.u32 %v676, 4294901760
      %v678 = vsub.f32 %v676, %v677
      %v679 = vand.u32 %v678, 4294901760
      %680 = vmatpush1.msra.mxu0 %v679
      %v681 = vand.u32 %v203, 4294901760
      %v682 = vsub.f32 %v203, %v681
      %v683 = vand.u32 %v682, 4294901760
      %v684 = vsub.f32 %v682, %v683
      %v685 = vand.u32 %v684, 4294901760
      %686 = vmatprep.subr.mxu0 %v685
      %v687 = vand.u32 %v202, 4294901760
      %v688 = vsub.f32 %v202, %v687
      %v689 = vand.u32 %v688, 4294901760
      %v690 = vsub.f32 %v688, %v689
      %v691 = vand.u32 %v690, 4294901760
      %692 = vmatpush1.msra.mxu0 %v691
      %v693 = vand.u32 %v205, 4294901760
      %v694 = vsub.f32 %v205, %v693
      %v695 = vand.u32 %v694, 4294901760
      %v696 = vsub.f32 %v694, %v695
      %v697 = vand.u32 %v696, 4294901760
      %698 = vmatprep.subr.mxu0 %v697
      %v699 = vand.u32 %v204, 4294901760
      %v700 = vsub.f32 %v204, %v699
      %v701 = vand.u32 %v700, 4294901760
      %v702 = vsub.f32 %v700, %v701
      %v703 = vand.u32 %v702, 4294901760
      %704 = vmatpush1.msra.mxu0 %v703
      %v705 = vand.u32 %v207, 4294901760
      %v706 = vsub.f32 %v207, %v705
      %v707 = vand.u32 %v706, 4294901760
      %v708 = vsub.f32 %v706, %v707
      %v709 = vand.u32 %v708, 4294901760
      %710 = vmatprep.subr.mxu0 %v709
      %v711 = vand.u32 %v206, 4294901760
      %v712 = vsub.f32 %v206, %v711
      %v713 = vand.u32 %v712, 4294901760
      %v714 = vsub.f32 %v712, %v713
      %v715 = vand.u32 %v714, 4294901760
      %716 = vmatpush1.msra.mxu0 %v715
      %v717 = vand.u32 %v209, 4294901760
      %v718 = vsub.f32 %v209, %v717
      %v719 = vand.u32 %v718, 4294901760
      %v720 = vsub.f32 %v718, %v719
      %v721 = vand.u32 %v720, 4294901760
      %722 = vmatprep.subr.mxu0 %v721
      %v723 = vand.u32 %v208, 4294901760
      %v724 = vsub.f32 %v208, %v723
      %v725 = vand.u32 %v724, 4294901760
      %v726 = vsub.f32 %v724, %v725
      %v727 = vand.u32 %v726, 4294901760
      %728 = vmatpush1.msra.mxu0 %v727
      %v729 = vand.u32 %v211, 4294901760
      %v730 = vsub.f32 %v211, %v729
      %v731 = vand.u32 %v730, 4294901760
      %v732 = vsub.f32 %v730, %v731
      %v733 = vand.u32 %v732, 4294901760
      %734 = vmatprep.subr.mxu0 %v733
      %v735 = vand.u32 %v210, 4294901760
      %v736 = vsub.f32 %v210, %v735
      %v737 = vand.u32 %v736, 4294901760
      %v738 = vsub.f32 %v736, %v737
      %v739 = vand.u32 %v738, 4294901760
      %740 = vmatpush1.msra.mxu0 %v739
      %v741 = vand.u32 %v213, 4294901760
      %v742 = vsub.f32 %v213, %v741
      %v743 = vand.u32 %v742, 4294901760
      %v744 = vsub.f32 %v742, %v743
      %v745 = vand.u32 %v744, 4294901760
      %746 = vmatprep.subr.mxu0 %v745
      %v747 = vand.u32 %v212, 4294901760
      %v748 = vsub.f32 %v212, %v747
      %v749 = vand.u32 %v748, 4294901760
      %v750 = vsub.f32 %v748, %v749
      %v751 = vand.u32 %v750, 4294901760
      %752 = vmatpush1.msra.mxu0 %v751
      %v753 = vand.u32 %v215, 4294901760
      %v754 = vsub.f32 %v215, %v753
      %v755 = vand.u32 %v754, 4294901760
      %v756 = vsub.f32 %v754, %v755
      %v757 = vand.u32 %v756, 4294901760
      %758 = vmatprep.subr.mxu0 %v757
      %v759 = vand.u32 %v214, 4294901760
      %v760 = vsub.f32 %v214, %v759
      %v761 = vand.u32 %v760, 4294901760
      %v762 = vsub.f32 %v760, %v761
      %v763 = vand.u32 %v762, 4294901760
      %764 = vmatpush1.msra.mxu0 %v763
      %v765 = vand.u32 %v217, 4294901760
      %v766 = vsub.f32 %v217, %v765
      %v767 = vand.u32 %v766, 4294901760
      %v768 = vsub.f32 %v766, %v767
      %v769 = vand.u32 %v768, 4294901760
      %770 = vmatprep.subr.mxu0 %v769
      %v771 = vand.u32 %v216, 4294901760
      %v772 = vsub.f32 %v216, %v771
      %v773 = vand.u32 %v772, 4294901760
      %v774 = vsub.f32 %v772, %v773
      %v775 = vand.u32 %v774, 4294901760
      %776 = vmatpush1.msra.mxu0 %v775
      %v777 = vand.u32 %v219, 4294901760
      %v778 = vsub.f32 %v219, %v777
      %v779 = vand.u32 %v778, 4294901760
      %v780 = vsub.f32 %v778, %v779
      %v781 = vand.u32 %v780, 4294901760
      %782 = vmatprep.subr.mxu0 %v781
      %v783 = vand.u32 %v218, 4294901760
      %v784 = vsub.f32 %v218, %v783
      %v785 = vand.u32 %v784, 4294901760
      %v786 = vsub.f32 %v784, %v785
      %v787 = vand.u32 %v786, 4294901760
      %788 = vmatpush1.msra.mxu0 %v787
      %v789 = vand.u32 %v221, 4294901760
      %v790 = vsub.f32 %v221, %v789
      %v791 = vand.u32 %v790, 4294901760
      %v792 = vsub.f32 %v790, %v791
      %v793 = vand.u32 %v792, 4294901760
      %794 = vmatprep.subr.mxu0 %v793
      %v795 = vand.u32 %v220, 4294901760
      %v796 = vsub.f32 %v220, %v795
      %v797 = vand.u32 %v796, 4294901760
      %v798 = vsub.f32 %v796, %v797
      %v799 = vand.u32 %v798, 4294901760
      %800 = vmatpush1.msra.mxu0 %v799
      %v801 = vand.u32 %v223, 4294901760
      %v802 = vsub.f32 %v223, %v801
      %v803 = vand.u32 %v802, 4294901760
      %v804 = vsub.f32 %v802, %v803
      %v805 = vand.u32 %v804, 4294901760
      %806 = vmatprep.subr.mxu0 %v805
      %v807 = vand.u32 %v222, 4294901760
      %v808 = vsub.f32 %v222, %v807
      %v809 = vand.u32 %v808, 4294901760
      %v810 = vsub.f32 %v808, %v809
      %v811 = vand.u32 %v810, 4294901760
      %812 = vmatpush1.msra.mxu0 %v811
      %v813 = vand.u32 %v225, 4294901760
      %v814 = vsub.f32 %v225, %v813
      %v815 = vand.u32 %v814, 4294901760
      %v816 = vsub.f32 %v814, %v815
      %v817 = vand.u32 %v816, 4294901760
      %818 = vmatprep.subr.mxu0 %v817
      %v819 = vand.u32 %v224, 4294901760
      %v820 = vsub.f32 %v224, %v819
      %v821 = vand.u32 %v820, 4294901760
      %v822 = vsub.f32 %v820, %v821
      %v823 = vand.u32 %v822, 4294901760
      %824 = vmatpush1.msra.mxu0 %v823
      %v825 = vand.u32 %v227, 4294901760
      %v826 = vsub.f32 %v227, %v825
      %v827 = vand.u32 %v826, 4294901760
      %v828 = vsub.f32 %v826, %v827
      %v829 = vand.u32 %v828, 4294901760
      %830 = vmatprep.subr.mxu0 %v829
      %v831 = vand.u32 %v226, 4294901760
      %v832 = vsub.f32 %v226, %v831
      %v833 = vand.u32 %v832, 4294901760
      %v834 = vsub.f32 %v832, %v833
      %v835 = vand.u32 %v834, 4294901760
      %836 = vmatpush1.msra.mxu0 %v835
      %v837 = vand.u32 %v153, 4294901760
      %838 = vmatprep.mubr.f32.mxu0 %v837
      %v839 = vand.u32 %v152, 4294901760
      %840 = vmatmul.mubr.f32.gmra.mrb[0].mxu0 %v839
      %v841 = vpop.f32.mrb[0].mxu0
      %v842 = vadd.f32 %v401, %v841
      %v843 = vpop.f32.mrb[0].mxu0
      %v844 = vadd.f32 %v403, %v843
      %v845 = vand.u32 %v156, 4294901760
      %846 = vmatprep.mubr.f32.mxu0 %v845
      %v847 = vand.u32 %v155, 4294901760
      %848 = vmatmul.mubr.f32.gmra.mrb[0].mxu0 %v847
      %v849 = vpop.f32.mrb[0].mxu0
      %v850 = vadd.f32 %v417, %v849
      %v851 = vpop.f32.mrb[0].mxu0
      %v852 = vadd.f32 %v419, %v851
      %v853 = vand.u32 %v159, 4294901760
      %854 = vmatprep.mubr.f32.mxu0 %v853
      %v855 = vand.u32 %v158, 4294901760
      %856 = vmatmul.mubr.f32.gmra.mrb[0].mxu0 %v855
      %v857 = vpop.f32.mrb[0].mxu0
      %v858 = vadd.f32 %v433, %v857
      %v859 = vpop.f32.mrb[0].mxu0
      %v860 = vadd.f32 %v435, %v859
      %v861 = vand.u32 %v162, 4294901760
      %862 = vmatprep.mubr.f32.mxu0 %v861
      %v863 = vand.u32 %v161, 4294901760
      %864 = vmatmul.mubr.f32.gmra.mrb[0].mxu0 %v863
      %v865 = vpop.f32.mrb[0].mxu0
      %v866 = vadd.f32 %v449, %v865
      %v867 = vpop.f32.mrb[0].mxu0
      %v868 = vadd.f32 %v451, %v867
      %869 = vdwg.mxu0
      %v870 = vand.u32 %v165, 4294901760
      %v871 = vsub.f32 %v165, %v870
      %872 = vmatprep.subr.mxu0 %v871
      %v873 = vand.u32 %v164, 4294901760
      %v874 = vsub.f32 %v164, %v873
      %875 = vmatpush1.msra.mxu0 %v874
      %v876 = vand.u32 %v167, 4294901760
      %v877 = vsub.f32 %v167, %v876
      %878 = vmatprep.subr.mxu0 %v877
      %v879 = vand.u32 %v166, 4294901760
      %v880 = vsub.f32 %v166, %v879
      %881 = vmatpush1.msra.mxu0 %v880
      %v882 = vand.u32 %v169, 4294901760
      %v883 = vsub.f32 %v169, %v882
      %884 = vmatprep.subr.mxu0 %v883
      %v885 = vand.u32 %v168, 4294901760
      %v886 = vsub.f32 %v168, %v885
      %887 = vmatpush1.msra.mxu0 %v886
      %v888 = vand.u32 %v171, 4294901760
      %v889 = vsub.f32 %v171, %v888
      %890 = vmatprep.subr.mxu0 %v889
      %v891 = vand.u32 %v170, 4294901760
      %v892 = vsub.f32 %v170, %v891
      %893 = vmatpush1.msra.mxu0 %v892
      %v894 = vand.u32 %v173, 4294901760
      %v895 = vsub.f32 %v173, %v894
      %896 = vmatprep.subr.mxu0 %v895
      %v897 = vand.u32 %v172, 4294901760
      %v898 = vsub.f32 %v172, %v897
      %899 = vmatpush1.msra.mxu0 %v898
      %v900 = vand.u32 %v175, 4294901760
      %v901 = vsub.f32 %v175, %v900
      %902 = vmatprep.subr.mxu0 %v901
      %v903 = vand.u32 %v174, 4294901760
      %v904 = vsub.f32 %v174, %v903
      %905 = vmatpush1.msra.mxu0 %v904
      %v906 = vand.u32 %v177, 4294901760
      %v907 = vsub.f32 %v177, %v906
      %908 = vmatprep.subr.mxu0 %v907
      %v909 = vand.u32 %v176, 4294901760
      %v910 = vsub.f32 %v176, %v909
      %911 = vmatpush1.msra.mxu0 %v910
      %v912 = vand.u32 %v179, 4294901760
      %v913 = vsub.f32 %v179, %v912
      %914 = vmatprep.subr.mxu0 %v913
      %v915 = vand.u32 %v178, 4294901760
      %v916 = vsub.f32 %v178, %v915
      %917 = vmatpush1.msra.mxu0 %v916
      %v918 = vand.u32 %v181, 4294901760
      %v919 = vsub.f32 %v181, %v918
      %920 = vmatprep.subr.mxu0 %v919
      %v921 = vand.u32 %v180, 4294901760
      %v922 = vsub.f32 %v180, %v921
      %923 = vmatpush1.msra.mxu0 %v922
      %v924 = vand.u32 %v183, 4294901760
      %v925 = vsub.f32 %v183, %v924
      %926 = vmatprep.subr.mxu0 %v925
      %v927 = vand.u32 %v182, 4294901760
      %v928 = vsub.f32 %v182, %v927
      %929 = vmatpush1.msra.mxu0 %v928
      %v930 = vand.u32 %v185, 4294901760
      %v931 = vsub.f32 %v185, %v930
      %932 = vmatprep.subr.mxu0 %v931
      %v933 = vand.u32 %v184, 4294901760
      %v934 = vsub.f32 %v184, %v933
      %935 = vmatpush1.msra.mxu0 %v934
      %v936 = vand.u32 %v187, 4294901760
      %v937 = vsub.f32 %v187, %v936
      %938 = vmatprep.subr.mxu0 %v937
      %v939 = vand.u32 %v186, 4294901760
      %v940 = vsub.f32 %v186, %v939
      %941 = vmatpush1.msra.mxu0 %v940
      %v942 = vand.u32 %v189, 4294901760
      %v943 = vsub.f32 %v189, %v942
      %944 = vmatprep.subr.mxu0 %v943
      %v945 = vand.u32 %v188, 4294901760
      %v946 = vsub.f32 %v188, %v945
      %947 = vmatpush1.msra.mxu0 %v946
      %v948 = vand.u32 %v191, 4294901760
      %v949 = vsub.f32 %v191, %v948
      %950 = vmatprep.subr.mxu0 %v949
      %v951 = vand.u32 %v190, 4294901760
      %v952 = vsub.f32 %v190, %v951
      %953 = vmatpush1.msra.mxu0 %v952
      %v954 = vand.u32 %v193, 4294901760
      %v955 = vsub.f32 %v193, %v954
      %956 = vmatprep.subr.mxu0 %v955
      %v957 = vand.u32 %v192, 4294901760
      %v958 = vsub.f32 %v192, %v957
      %959 = vmatpush1.msra.mxu0 %v958
      %v960 = vand.u32 %v195, 4294901760
      %v961 = vsub.f32 %v195, %v960
      %962 = vmatprep.subr.mxu0 %v961
      %v963 = vand.u32 %v194, 4294901760
      %v964 = vsub.f32 %v194, %v963
      %965 = vmatpush1.msra.mxu0 %v964
      %v966 = vand.u32 %v197, 4294901760
      %v967 = vsub.f32 %v197, %v966
      %968 = vmatprep.subr.mxu0 %v967
      %v969 = vand.u32 %v196, 4294901760
      %v970 = vsub.f32 %v196, %v969
      %971 = vmatpush1.msra.mxu0 %v970
      %v972 = vand.u32 %v199, 4294901760
      %v973 = vsub.f32 %v199, %v972
      %974 = vmatprep.subr.mxu0 %v973
      %v975 = vand.u32 %v198, 4294901760
      %v976 = vsub.f32 %v198, %v975
      %977 = vmatpush1.msra.mxu0 %v976
      %v978 = vand.u32 %v201, 4294901760
      %v979 = vsub.f32 %v201, %v978
      %980 = vmatprep.subr.mxu0 %v979
      %v981 = vand.u32 %v200, 4294901760
      %v982 = vsub.f32 %v200, %v981
      %983 = vmatpush1.msra.mxu0 %v982
      %v984 = vand.u32 %v203, 4294901760
      %v985 = vsub.f32 %v203, %v984
      %986 = vmatprep.subr.mxu0 %v985
      %v987 = vand.u32 %v202, 4294901760
      %v988 = vsub.f32 %v202, %v987
      %989 = vmatpush1.msra.mxu0 %v988
      %v990 = vand.u32 %v205, 4294901760
      %v991 = vsub.f32 %v205, %v990
      %992 = vmatprep.subr.mxu0 %v991
      %v993 = vand.u32 %v204, 4294901760
      %v994 = vsub.f32 %v204, %v993
      %995 = vmatpush1.msra.mxu0 %v994
      %v996 = vand.u32 %v207, 4294901760
      %v997 = vsub.f32 %v207, %v996
      %998 = vmatprep.subr.mxu0 %v997
      %v999 = vand.u32 %v206, 4294901760
      %v1000 = vsub.f32 %v206, %v999
      %1001 = vmatpush1.msra.mxu0 %v1000
      %v1002 = vand.u32 %v209, 4294901760
      %v1003 = vsub.f32 %v209, %v1002
      %1004 = vmatprep.subr.mxu0 %v1003
      %v1005 = vand.u32 %v208, 4294901760
      %v1006 = vsub.f32 %v208, %v1005
      %1007 = vmatpush1.msra.mxu0 %v1006
      %v1008 = vand.u32 %v211, 4294901760
      %v1009 = vsub.f32 %v211, %v1008
      %1010 = vmatprep.subr.mxu0 %v1009
      %v1011 = vand.u32 %v210, 4294901760
      %v1012 = vsub.f32 %v210, %v1011
      %1013 = vmatpush1.msra.mxu0 %v1012
      %v1014 = vand.u32 %v213, 4294901760
      %v1015 = vsub.f32 %v213, %v1014
      %1016 = vmatprep.subr.mxu0 %v1015
      %v1017 = vand.u32 %v212, 4294901760
      %v1018 = vsub.f32 %v212, %v1017
      %1019 = vmatpush1.msra.mxu0 %v1018
      %v1020 = vand.u32 %v215, 4294901760
      %v1021 = vsub.f32 %v215, %v1020
      %1022 = vmatprep.subr.mxu0 %v1021
      %v1023 = vand.u32 %v214, 4294901760
      %v1024 = vsub.f32 %v214, %v1023
      %1025 = vmatpush1.msra.mxu0 %v1024
      %v1026 = vand.u32 %v217, 4294901760
      %v1027 = vsub.f32 %v217, %v1026
      %1028 = vmatprep.subr.mxu0 %v1027
      %v1029 = vand.u32 %v216, 4294901760
      %v1030 = vsub.f32 %v216, %v1029
      %1031 = vmatpush1.msra.mxu0 %v1030
      %v1032 = vand.u32 %v219, 4294901760
      %v1033 = vsub.f32 %v219, %v1032
      %1034 = vmatprep.subr.mxu0 %v1033
      %v1035 = vand.u32 %v218, 4294901760
      %v1036 = vsub.f32 %v218, %v1035
      %1037 = vmatpush1.msra.mxu0 %v1036
      %v1038 = vand.u32 %v221, 4294901760
      %v1039 = vsub.f32 %v221, %v1038
      %1040 = vmatprep.subr.mxu0 %v1039
      %v1041 = vand.u32 %v220, 4294901760
      %v1042 = vsub.f32 %v220, %v1041
      %1043 = vmatpush1.msra.mxu0 %v1042
      %v1044 = vand.u32 %v223, 4294901760
      %v1045 = vsub.f32 %v223, %v1044
      %1046 = vmatprep.subr.mxu0 %v1045
      %v1047 = vand.u32 %v222, 4294901760
      %v1048 = vsub.f32 %v222, %v1047
      %1049 = vmatpush1.msra.mxu0 %v1048
      %v1050 = vand.u32 %v225, 4294901760
      %v1051 = vsub.f32 %v225, %v1050
      %1052 = vmatprep.subr.mxu0 %v1051
      %v1053 = vand.u32 %v224, 4294901760
      %v1054 = vsub.f32 %v224, %v1053
      %1055 = vmatpush1.msra.mxu0 %v1054
      %v1056 = vand.u32 %v227, 4294901760
      %v1057 = vsub.f32 %v227, %v1056
      %1058 = vmatprep.subr.mxu0 %v1057
      %v1059 = vand.u32 %v226, 4294901760
      %v1060 = vsub.f32 %v226, %v1059
      %1061 = vmatpush1.msra.mxu0 %v1060
      %v1062 = vand.u32 %v153, 4294901760
      %v1063 = vsub.f32 %v153, %v1062
      %1064 = vmatprep.mubr.f32.mxu0 %v1063
      %v1065 = vand.u32 %v152, 4294901760
      %v1066 = vsub.f32 %v152, %v1065
      %1067 = vmatmul.mubr.f32.gmra.mrb[0].mxu0 %v1066
      %v1068 = vpop.f32.mrb[0].mxu0
      %v1069 = vadd.f32 %v842, %v1068
      %v1070 = vpop.f32.mrb[0].mxu0
      %v1071 = vadd.f32 %v844, %v1070
      %v1072 = vand.u32 %v156, 4294901760
      %v1073 = vsub.f32 %v156, %v1072
      %1074 = vmatprep.mubr.f32.mxu0 %v1073
      %v1075 = vand.u32 %v155, 4294901760
      %v1076 = vsub.f32 %v155, %v1075
      %1077 = vmatmul.mubr.f32.gmra.mrb[0].mxu0 %v1076
      %v1078 = vpop.f32.mrb[0].mxu0
      %v1079 = vadd.f32 %v850, %v1078
      %v1080 = vpop.f32.mrb[0].mxu0
      %v1081 = vadd.f32 %v852, %v1080
      %v1082 = vand.u32 %v159, 4294901760
      %v1083 = vsub.f32 %v159, %v1082
      %1084 = vmatprep.mubr.f32.mxu0 %v1083
      %v1085 = vand.u32 %v158, 4294901760
      %v1086 = vsub.f32 %v158, %v1085
      %1087 = vmatmul.mubr.f32.gmra.mrb[0].mxu0 %v1086
      %v1088 = vpop.f32.mrb[0].mxu0
      %v1089 = vadd.f32 %v858, %v1088
      %v1090 = vpop.f32.mrb[0].mxu0
      %v1091 = vadd.f32 %v860, %v1090
      %v1092 = vand.u32 %v162, 4294901760
      %v1093 = vsub.f32 %v162, %v1092
      %1094 = vmatprep.mubr.f32.mxu0 %v1093
      %v1095 = vand.u32 %v161, 4294901760
      %v1096 = vsub.f32 %v161, %v1095
      %1097 = vmatmul.mubr.f32.gmra.mrb[0].mxu0 %v1096
      %v1098 = vpop.f32.mrb[0].mxu0
      %v1099 = vadd.f32 %v866, %v1098
      %v1100 = vpop.f32.mrb[0].mxu0
      %v1101 = vadd.f32 %v868, %v1100
      %1102 = vdwg.mxu0
      %v1103 = vand.u32 %v165, 4294901760
      %1104 = vmatprep.subr.mxu0 %v1103
      %v1105 = vand.u32 %v164, 4294901760
      %1106 = vmatpush1.msra.mxu0 %v1105
      %v1107 = vand.u32 %v167, 4294901760
      %1108 = vmatprep.subr.mxu0 %v1107
      %v1109 = vand.u32 %v166, 4294901760
      %1110 = vmatpush1.msra.mxu0 %v1109
      %v1111 = vand.u32 %v169, 4294901760
      %1112 = vmatprep.subr.mxu0 %v1111
      %v1113 = vand.u32 %v168, 4294901760
      %1114 = vmatpush1.msra.mxu0 %v1113
      %v1115 = vand.u32 %v171, 4294901760
      %1116 = vmatprep.subr.mxu0 %v1115
      %v1117 = vand.u32 %v170, 4294901760
      %1118 = vmatpush1.msra.mxu0 %v1117
      %v1119 = vand.u32 %v173, 4294901760
      %1120 = vmatprep.subr.mxu0 %v1119
      %v1121 = vand.u32 %v172, 4294901760
      %1122 = vmatpush1.msra.mxu0 %v1121
      %v1123 = vand.u32 %v175, 4294901760
      %1124 = vmatprep.subr.mxu0 %v1123
      %v1125 = vand.u32 %v174, 4294901760
      %1126 = vmatpush1.msra.mxu0 %v1125
      %v1127 = vand.u32 %v177, 4294901760
      %1128 = vmatprep.subr.mxu0 %v1127
      %v1129 = vand.u32 %v176, 4294901760
      %1130 = vmatpush1.msra.mxu0 %v1129
      %v1131 = vand.u32 %v179, 4294901760
      %1132 = vmatprep.subr.mxu0 %v1131
      %v1133 = vand.u32 %v178, 4294901760
      %1134 = vmatpush1.msra.mxu0 %v1133
      %v1135 = vand.u32 %v181, 4294901760
      %1136 = vmatprep.subr.mxu0 %v1135
      %v1137 = vand.u32 %v180, 4294901760
      %1138 = vmatpush1.msra.mxu0 %v1137
      %v1139 = vand.u32 %v183, 4294901760
      %1140 = vmatprep.subr.mxu0 %v1139
      %v1141 = vand.u32 %v182, 4294901760
      %1142 = vmatpush1.msra.mxu0 %v1141
      %v1143 = vand.u32 %v185, 4294901760
      %1144 = vmatprep.subr.mxu0 %v1143
      %v1145 = vand.u32 %v184, 4294901760
      %1146 = vmatpush1.msra.mxu0 %v1145
      %v1147 = vand.u32 %v187, 4294901760
      %1148 = vmatprep.subr.mxu0 %v1147
      %v1149 = vand.u32 %v186, 4294901760
      %1150 = vmatpush1.msra.mxu0 %v1149
      %v1151 = vand.u32 %v189, 4294901760
      %1152 = vmatprep.subr.mxu0 %v1151
      %v1153 = vand.u32 %v188, 4294901760
      %1154 = vmatpush1.msra.mxu0 %v1153
      %v1155 = vand.u32 %v191, 4294901760
      %1156 = vmatprep.subr.mxu0 %v1155
      %v1157 = vand.u32 %v190, 4294901760
      %1158 = vmatpush1.msra.mxu0 %v1157
      %v1159 = vand.u32 %v193, 4294901760
      %1160 = vmatprep.subr.mxu0 %v1159
      %v1161 = vand.u32 %v192, 4294901760
      %1162 = vmatpush1.msra.mxu0 %v1161
      %v1163 = vand.u32 %v195, 4294901760
      %1164 = vmatprep.subr.mxu0 %v1163
      %v1165 = vand.u32 %v194, 4294901760
      %1166 = vmatpush1.msra.mxu0 %v1165
      %v1167 = vand.u32 %v197, 4294901760
      %1168 = vmatprep.subr.mxu0 %v1167
      %v1169 = vand.u32 %v196, 4294901760
      %1170 = vmatpush1.msra.mxu0 %v1169
      %v1171 = vand.u32 %v199, 4294901760
      %1172 = vmatprep.subr.mxu0 %v1171
      %v1173 = vand.u32 %v198, 4294901760
      %1174 = vmatpush1.msra.mxu0 %v1173
      %v1175 = vand.u32 %v201, 4294901760
      %1176 = vmatprep.subr.mxu0 %v1175
      %v1177 = vand.u32 %v200, 4294901760
      %1178 = vmatpush1.msra.mxu0 %v1177
      %v1179 = vand.u32 %v203, 4294901760
      %1180 = vmatprep.subr.mxu0 %v1179
      %v1181 = vand.u32 %v202, 4294901760
      %1182 = vmatpush1.msra.mxu0 %v1181
      %v1183 = vand.u32 %v205, 4294901760
      %1184 = vmatprep.subr.mxu0 %v1183
      %v1185 = vand.u32 %v204, 4294901760
      %1186 = vmatpush1.msra.mxu0 %v1185
      %v1187 = vand.u32 %v207, 4294901760
      %1188 = vmatprep.subr.mxu0 %v1187
      %v1189 = vand.u32 %v206, 4294901760
      %1190 = vmatpush1.msra.mxu0 %v1189
      %v1191 = vand.u32 %v209, 4294901760
      %1192 = vmatprep.subr.mxu0 %v1191
      %v1193 = vand.u32 %v208, 4294901760
      %1194 = vmatpush1.msra.mxu0 %v1193
      %v1195 = vand.u32 %v211, 4294901760
      %1196 = vmatprep.subr.mxu0 %v1195
      %v1197 = vand.u32 %v210, 4294901760
      %1198 = vmatpush1.msra.mxu0 %v1197
      %v1199 = vand.u32 %v213, 4294901760
      %1200 = vmatprep.subr.mxu0 %v1199
      %v1201 = vand.u32 %v212, 4294901760
      %1202 = vmatpush1.msra.mxu0 %v1201
      %v1203 = vand.u32 %v215, 4294901760
      %1204 = vmatprep.subr.mxu0 %v1203
      %v1205 = vand.u32 %v214, 4294901760
      %1206 = vmatpush1.msra.mxu0 %v1205
      %v1207 = vand.u32 %v217, 4294901760
      %1208 = vmatprep.subr.mxu0 %v1207
      %v1209 = vand.u32 %v216, 4294901760
      %1210 = vmatpush1.msra.mxu0 %v1209
      %v1211 = vand.u32 %v219, 4294901760
      %1212 = vmatprep.subr.mxu0 %v1211
      %v1213 = vand.u32 %v218, 4294901760
      %1214 = vmatpush1.msra.mxu0 %v1213
      %v1215 = vand.u32 %v221, 4294901760
      %1216 = vmatprep.subr.mxu0 %v1215
      %v1217 = vand.u32 %v220, 4294901760
      %1218 = vmatpush1.msra.mxu0 %v1217
      %v1219 = vand.u32 %v223, 4294901760
      %1220 = vmatprep.subr.mxu0 %v1219
      %v1221 = vand.u32 %v222, 4294901760
      %1222 = vmatpush1.msra.mxu0 %v1221
      %v1223 = vand.u32 %v225, 4294901760
      %1224 = vmatprep.subr.mxu0 %v1223
      %v1225 = vand.u32 %v224, 4294901760
      %1226 = vmatpush1.msra.mxu0 %v1225
      %v1227 = vand.u32 %v227, 4294901760
      %1228 = vmatprep.subr.mxu0 %v1227
      %v1229 = vand.u32 %v226, 4294901760
      %1230 = vmatpush1.msra.mxu0 %v1229
      %v1231 = vand.u32 %v153, 4294901760
      %v1232 = vsub.f32 %v153, %v1231
      %v1233 = vand.u32 %v1232, 4294901760
      %1234 = vmatprep.mubr.f32.mxu0 %v1233
      %v1235 = vand.u32 %v152, 4294901760
      %v1236 = vsub.f32 %v152, %v1235
      %v1237 = vand.u32 %v1236, 4294901760
      %1238 = vmatmul.mubr.f32.gmra.mrb[0].mxu0 %v1237
      %v1239 = vpop.f32.mrb[0].mxu0
      %v1240 = vadd.f32 %v1069, %v1239
      %v1241 = vpop.f32.mrb[0].mxu0
      %v1242 = vadd.f32 %v1071, %v1241
      %v1243 = vand.u32 %v156, 4294901760
      %v1244 = vsub.f32 %v156, %v1243
      %v1245 = vand.u32 %v1244, 4294901760
      %1246 = vmatprep.mubr.f32.mxu0 %v1245
      %v1247 = vand.u32 %v155, 4294901760
      %v1248 = vsub.f32 %v155, %v1247
      %v1249 = vand.u32 %v1248, 4294901760
      %1250 = vmatmul.mubr.f32.gmra.mrb[0].mxu0 %v1249
      %v1251 = vpop.f32.mrb[0].mxu0
      %v1252 = vadd.f32 %v1079, %v1251
      %v1253 = vpop.f32.mrb[0].mxu0
      %v1254 = vadd.f32 %v1081, %v1253
      %v1255 = vand.u32 %v159, 4294901760
      %v1256 = vsub.f32 %v159, %v1255
      %v1257 = vand.u32 %v1256, 4294901760
      %1258 = vmatprep.mubr.f32.mxu0 %v1257
      %v1259 = vand.u32 %v158, 4294901760
      %v1260 = vsub.f32 %v158, %v1259
      %v1261 = vand.u32 %v1260, 4294901760
      %1262 = vmatmul.mubr.f32.gmra.mrb[0].mxu0 %v1261
      %v1263 = vpop.f32.mrb[0].mxu0
      %v1264 = vadd.f32 %v1089, %v1263
      %v1265 = vpop.f32.mrb[0].mxu0
      %v1266 = vadd.f32 %v1091, %v1265
      %v1267 = vand.u32 %v162, 4294901760
      %v1268 = vsub.f32 %v162, %v1267
      %v1269 = vand.u32 %v1268, 4294901760
      %1270 = vmatprep.mubr.f32.mxu0 %v1269
      %v1271 = vand.u32 %v161, 4294901760
      %v1272 = vsub.f32 %v161, %v1271
      %v1273 = vand.u32 %v1272, 4294901760
      %1274 = vmatmul.mubr.f32.gmra.mrb[0].mxu0 %v1273
      %v1275 = vpop.f32.mrb[0].mxu0
      %v1276 = vadd.f32 %v1099, %v1275
      %v1277 = vpop.f32.mrb[0].mxu0
      %v1278 = vadd.f32 %v1101, %v1277
      %1279 = vdwg.mxu0
      %v1280 = vand.u32 %v165, 4294901760
      %v1281 = vsub.f32 %v165, %v1280
      %v1282 = vand.u32 %v1281, 4294901760
      %1283 = vmatprep.subr.mxu0 %v1282
      %v1284 = vand.u32 %v164, 4294901760
      %v1285 = vsub.f32 %v164, %v1284
      %v1286 = vand.u32 %v1285, 4294901760
      %1287 = vmatpush1.msra.mxu0 %v1286
      %v1288 = vand.u32 %v167, 4294901760
      %v1289 = vsub.f32 %v167, %v1288
      %v1290 = vand.u32 %v1289, 4294901760
      %1291 = vmatprep.subr.mxu0 %v1290
      %v1292 = vand.u32 %v166, 4294901760
      %v1293 = vsub.f32 %v166, %v1292
      %v1294 = vand.u32 %v1293, 4294901760
      %1295 = vmatpush1.msra.mxu0 %v1294
      %v1296 = vand.u32 %v169, 4294901760
      %v1297 = vsub.f32 %v169, %v1296
      %v1298 = vand.u32 %v1297, 4294901760
      %1299 = vmatprep.subr.mxu0 %v1298
      %v1300 = vand.u32 %v168, 4294901760
      %v1301 = vsub.f32 %v168, %v1300
      %v1302 = vand.u32 %v1301, 4294901760
      %1303 = vmatpush1.msra.mxu0 %v1302
      %v1304 = vand.u32 %v171, 4294901760
      %v1305 = vsub.f32 %v171, %v1304
      %v1306 = vand.u32 %v1305, 4294901760
      %1307 = vmatprep.subr.mxu0 %v1306
      %v1308 = vand.u32 %v170, 4294901760
      %v1309 = vsub.f32 %v170, %v1308
      %v1310 = vand.u32 %v1309, 4294901760
      %1311 = vmatpush1.msra.mxu0 %v1310
      %v1312 = vand.u32 %v173, 4294901760
      %v1313 = vsub.f32 %v173, %v1312
      %v1314 = vand.u32 %v1313, 4294901760
      %1315 = vmatprep.subr.mxu0 %v1314
      %v1316 = vand.u32 %v172, 4294901760
      %v1317 = vsub.f32 %v172, %v1316
      %v1318 = vand.u32 %v1317, 4294901760
      %1319 = vmatpush1.msra.mxu0 %v1318
      %v1320 = vand.u32 %v175, 4294901760
      %v1321 = vsub.f32 %v175, %v1320
      %v1322 = vand.u32 %v1321, 4294901760
      %1323 = vmatprep.subr.mxu0 %v1322
      %v1324 = vand.u32 %v174, 4294901760
      %v1325 = vsub.f32 %v174, %v1324
      %v1326 = vand.u32 %v1325, 4294901760
      %1327 = vmatpush1.msra.mxu0 %v1326
      %v1328 = vand.u32 %v177, 4294901760
      %v1329 = vsub.f32 %v177, %v1328
      %v1330 = vand.u32 %v1329, 4294901760
      %1331 = vmatprep.subr.mxu0 %v1330
      %v1332 = vand.u32 %v176, 4294901760
      %v1333 = vsub.f32 %v176, %v1332
      %v1334 = vand.u32 %v1333, 4294901760
      %1335 = vmatpush1.msra.mxu0 %v1334
      %v1336 = vand.u32 %v179, 4294901760
      %v1337 = vsub.f32 %v179, %v1336
      %v1338 = vand.u32 %v1337, 4294901760
      %1339 = vmatprep.subr.mxu0 %v1338
      %v1340 = vand.u32 %v178, 4294901760
      %v1341 = vsub.f32 %v178, %v1340
      %v1342 = vand.u32 %v1341, 4294901760
      %1343 = vmatpush1.msra.mxu0 %v1342
      %v1344 = vand.u32 %v181, 4294901760
      %v1345 = vsub.f32 %v181, %v1344
      %v1346 = vand.u32 %v1345, 4294901760
      %1347 = vmatprep.subr.mxu0 %v1346
      %v1348 = vand.u32 %v180, 4294901760
      %v1349 = vsub.f32 %v180, %v1348
      %v1350 = vand.u32 %v1349, 4294901760
      %1351 = vmatpush1.msra.mxu0 %v1350
      %v1352 = vand.u32 %v183, 4294901760
      %v1353 = vsub.f32 %v183, %v1352
      %v1354 = vand.u32 %v1353, 4294901760
      %1355 = vmatprep.subr.mxu0 %v1354
      %v1356 = vand.u32 %v182, 4294901760
      %v1357 = vsub.f32 %v182, %v1356
      %v1358 = vand.u32 %v1357, 4294901760
      %1359 = vmatpush1.msra.mxu0 %v1358
      %v1360 = vand.u32 %v185, 4294901760
      %v1361 = vsub.f32 %v185, %v1360
      %v1362 = vand.u32 %v1361, 4294901760
      %1363 = vmatprep.subr.mxu0 %v1362
      %v1364 = vand.u32 %v184, 4294901760
      %v1365 = vsub.f32 %v184, %v1364
      %v1366 = vand.u32 %v1365, 4294901760
      %1367 = vmatpush1.msra.mxu0 %v1366
      %v1368 = vand.u32 %v187, 4294901760
      %v1369 = vsub.f32 %v187, %v1368
      %v1370 = vand.u32 %v1369, 4294901760
      %1371 = vmatprep.subr.mxu0 %v1370
      %v1372 = vand.u32 %v186, 4294901760
      %v1373 = vsub.f32 %v186, %v1372
      %v1374 = vand.u32 %v1373, 4294901760
      %1375 = vmatpush1.msra.mxu0 %v1374
      %v1376 = vand.u32 %v189, 4294901760
      %v1377 = vsub.f32 %v189, %v1376
      %v1378 = vand.u32 %v1377, 4294901760
      %1379 = vmatprep.subr.mxu0 %v1378
      %v1380 = vand.u32 %v188, 4294901760
      %v1381 = vsub.f32 %v188, %v1380
      %v1382 = vand.u32 %v1381, 4294901760
      %1383 = vmatpush1.msra.mxu0 %v1382
      %v1384 = vand.u32 %v191, 4294901760
      %v1385 = vsub.f32 %v191, %v1384
      %v1386 = vand.u32 %v1385, 4294901760
      %1387 = vmatprep.subr.mxu0 %v1386
      %v1388 = vand.u32 %v190, 4294901760
      %v1389 = vsub.f32 %v190, %v1388
      %v1390 = vand.u32 %v1389, 4294901760
      %1391 = vmatpush1.msra.mxu0 %v1390
      %v1392 = vand.u32 %v193, 4294901760
      %v1393 = vsub.f32 %v193, %v1392
      %v1394 = vand.u32 %v1393, 4294901760
      %1395 = vmatprep.subr.mxu0 %v1394
      %v1396 = vand.u32 %v192, 4294901760
      %v1397 = vsub.f32 %v192, %v1396
      %v1398 = vand.u32 %v1397, 4294901760
      %1399 = vmatpush1.msra.mxu0 %v1398
      %v1400 = vand.u32 %v195, 4294901760
      %v1401 = vsub.f32 %v195, %v1400
      %v1402 = vand.u32 %v1401, 4294901760
      %1403 = vmatprep.subr.mxu0 %v1402
      %v1404 = vand.u32 %v194, 4294901760
      %v1405 = vsub.f32 %v194, %v1404
      %v1406 = vand.u32 %v1405, 4294901760
      %1407 = vmatpush1.msra.mxu0 %v1406
      %v1408 = vand.u32 %v197, 4294901760
      %v1409 = vsub.f32 %v197, %v1408
      %v1410 = vand.u32 %v1409, 4294901760
      %1411 = vmatprep.subr.mxu0 %v1410
      %v1412 = vand.u32 %v196, 4294901760
      %v1413 = vsub.f32 %v196, %v1412
      %v1414 = vand.u32 %v1413, 4294901760
      %1415 = vmatpush1.msra.mxu0 %v1414
      %v1416 = vand.u32 %v199, 4294901760
      %v1417 = vsub.f32 %v199, %v1416
      %v1418 = vand.u32 %v1417, 4294901760
      %1419 = vmatprep.subr.mxu0 %v1418
      %v1420 = vand.u32 %v198, 4294901760
      %v1421 = vsub.f32 %v198, %v1420
      %v1422 = vand.u32 %v1421, 4294901760
      %1423 = vmatpush1.msra.mxu0 %v1422
      %v1424 = vand.u32 %v201, 4294901760
      %v1425 = vsub.f32 %v201, %v1424
      %v1426 = vand.u32 %v1425, 4294901760
      %1427 = vmatprep.subr.mxu0 %v1426
      %v1428 = vand.u32 %v200, 4294901760
      %v1429 = vsub.f32 %v200, %v1428
      %v1430 = vand.u32 %v1429, 4294901760
      %1431 = vmatpush1.msra.mxu0 %v1430
      %v1432 = vand.u32 %v203, 4294901760
      %v1433 = vsub.f32 %v203, %v1432
      %v1434 = vand.u32 %v1433, 4294901760
      %1435 = vmatprep.subr.mxu0 %v1434
      %v1436 = vand.u32 %v202, 4294901760
      %v1437 = vsub.f32 %v202, %v1436
      %v1438 = vand.u32 %v1437, 4294901760
      %1439 = vmatpush1.msra.mxu0 %v1438
      %v1440 = vand.u32 %v205, 4294901760
      %v1441 = vsub.f32 %v205, %v1440
      %v1442 = vand.u32 %v1441, 4294901760
      %1443 = vmatprep.subr.mxu0 %v1442
      %v1444 = vand.u32 %v204, 4294901760
      %v1445 = vsub.f32 %v204, %v1444
      %v1446 = vand.u32 %v1445, 4294901760
      %1447 = vmatpush1.msra.mxu0 %v1446
      %v1448 = vand.u32 %v207, 4294901760
      %v1449 = vsub.f32 %v207, %v1448
      %v1450 = vand.u32 %v1449, 4294901760
      %1451 = vmatprep.subr.mxu0 %v1450
      %v1452 = vand.u32 %v206, 4294901760
      %v1453 = vsub.f32 %v206, %v1452
      %v1454 = vand.u32 %v1453, 4294901760
      %1455 = vmatpush1.msra.mxu0 %v1454
      %v1456 = vand.u32 %v209, 4294901760
      %v1457 = vsub.f32 %v209, %v1456
      %v1458 = vand.u32 %v1457, 4294901760
      %1459 = vmatprep.subr.mxu0 %v1458
      %v1460 = vand.u32 %v208, 4294901760
      %v1461 = vsub.f32 %v208, %v1460
      %v1462 = vand.u32 %v1461, 4294901760
      %1463 = vmatpush1.msra.mxu0 %v1462
      %v1464 = vand.u32 %v211, 4294901760
      %v1465 = vsub.f32 %v211, %v1464
      %v1466 = vand.u32 %v1465, 4294901760
      %1467 = vmatprep.subr.mxu0 %v1466
      %v1468 = vand.u32 %v210, 4294901760
      %v1469 = vsub.f32 %v210, %v1468
      %v1470 = vand.u32 %v1469, 4294901760
      %1471 = vmatpush1.msra.mxu0 %v1470
      %v1472 = vand.u32 %v213, 4294901760
      %v1473 = vsub.f32 %v213, %v1472
      %v1474 = vand.u32 %v1473, 4294901760
      %1475 = vmatprep.subr.mxu0 %v1474
      %v1476 = vand.u32 %v212, 4294901760
      %v1477 = vsub.f32 %v212, %v1476
      %v1478 = vand.u32 %v1477, 4294901760
      %1479 = vmatpush1.msra.mxu0 %v1478
      %v1480 = vand.u32 %v215, 4294901760
      %v1481 = vsub.f32 %v215, %v1480
      %v1482 = vand.u32 %v1481, 4294901760
      %1483 = vmatprep.subr.mxu0 %v1482
      %v1484 = vand.u32 %v214, 4294901760
      %v1485 = vsub.f32 %v214, %v1484
      %v1486 = vand.u32 %v1485, 4294901760
      %1487 = vmatpush1.msra.mxu0 %v1486
      %v1488 = vand.u32 %v217, 4294901760
      %v1489 = vsub.f32 %v217, %v1488
      %v1490 = vand.u32 %v1489, 4294901760
      %1491 = vmatprep.subr.mxu0 %v1490
      %v1492 = vand.u32 %v216, 4294901760
      %v1493 = vsub.f32 %v216, %v1492
      %v1494 = vand.u32 %v1493, 4294901760
      %1495 = vmatpush1.msra.mxu0 %v1494
      %v1496 = vand.u32 %v219, 4294901760
      %v1497 = vsub.f32 %v219, %v1496
      %v1498 = vand.u32 %v1497, 4294901760
      %1499 = vmatprep.subr.mxu0 %v1498
      %v1500 = vand.u32 %v218, 4294901760
      %v1501 = vsub.f32 %v218, %v1500
      %v1502 = vand.u32 %v1501, 4294901760
      %1503 = vmatpush1.msra.mxu0 %v1502
      %v1504 = vand.u32 %v221, 4294901760
      %v1505 = vsub.f32 %v221, %v1504
      %v1506 = vand.u32 %v1505, 4294901760
      %1507 = vmatprep.subr.mxu0 %v1506
      %v1508 = vand.u32 %v220, 4294901760
      %v1509 = vsub.f32 %v220, %v1508
      %v1510 = vand.u32 %v1509, 4294901760
      %1511 = vmatpush1.msra.mxu0 %v1510
      %v1512 = vand.u32 %v223, 4294901760
      %v1513 = vsub.f32 %v223, %v1512
      %v1514 = vand.u32 %v1513, 4294901760
      %1515 = vmatprep.subr.mxu0 %v1514
      %v1516 = vand.u32 %v222, 4294901760
      %v1517 = vsub.f32 %v222, %v1516
      %v1518 = vand.u32 %v1517, 4294901760
      %1519 = vmatpush1.msra.mxu0 %v1518
      %v1520 = vand.u32 %v225, 4294901760
      %v1521 = vsub.f32 %v225, %v1520
      %v1522 = vand.u32 %v1521, 4294901760
      %1523 = vmatprep.subr.mxu0 %v1522
      %v1524 = vand.u32 %v224, 4294901760
      %v1525 = vsub.f32 %v224, %v1524
      %v1526 = vand.u32 %v1525, 4294901760
      %1527 = vmatpush1.msra.mxu0 %v1526
      %v1528 = vand.u32 %v227, 4294901760
      %v1529 = vsub.f32 %v227, %v1528
      %v1530 = vand.u32 %v1529, 4294901760
      %1531 = vmatprep.subr.mxu0 %v1530
      %v1532 = vand.u32 %v226, 4294901760
      %v1533 = vsub.f32 %v226, %v1532
      %v1534 = vand.u32 %v1533, 4294901760
      %1535 = vmatpush1.msra.mxu0 %v1534
      %v1536 = vand.u32 %v153, 4294901760
      %1537 = vmatprep.mubr.f32.mxu0 %v1536
      %v1538 = vand.u32 %v152, 4294901760
      %1539 = vmatmul.mubr.f32.gmra.mrb[0].mxu0 %v1538
      %v1540 = vpop.f32.mrb[0].mxu0
      %v1541 = vadd.f32 %v1240, %v1540
      %v1542 = vpop.f32.mrb[0].mxu0
      %v1543 = vadd.f32 %v1242, %v1542
      %v1544 = vand.u32 %v156, 4294901760
      %1545 = vmatprep.mubr.f32.mxu0 %v1544
      %v1546 = vand.u32 %v155, 4294901760
      %1547 = vmatmul.mubr.f32.gmra.mrb[0].mxu0 %v1546
      %v1548 = vpop.f32.mrb[0].mxu0
      %v1549 = vadd.f32 %v1252, %v1548
      %v1550 = vpop.f32.mrb[0].mxu0
      %v1551 = vadd.f32 %v1254, %v1550
      %v1552 = vand.u32 %v159, 4294901760
      %1553 = vmatprep.mubr.f32.mxu0 %v1552
      %v1554 = vand.u32 %v158, 4294901760
      %1555 = vmatmul.mubr.f32.gmra.mrb[0].mxu0 %v1554
      %v1556 = vpop.f32.mrb[0].mxu0
      %v1557 = vadd.f32 %v1264, %v1556
      %v1558 = vpop.f32.mrb[0].mxu0
      %v1559 = vadd.f32 %v1266, %v1558
      %v1560 = vand.u32 %v162, 4294901760
      %1561 = vmatprep.mubr.f32.mxu0 %v1560
      %v1562 = vand.u32 %v161, 4294901760
      %1563 = vmatmul.mubr.f32.gmra.mrb[0].mxu0 %v1562
      %v1564 = vpop.f32.mrb[0].mxu0
      %v1565 = vadd.f32 %v1276, %v1564
      %v1566 = vpop.f32.mrb[0].mxu0
      %v1567 = vadd.f32 %v1278, %v1566
      %1568 = vdwg.mxu0
      %v1569 = vand.u32 %v165, 4294901760
      %1570 = vmatprep.subr.mxu0 %v1569
      %v1571 = vand.u32 %v164, 4294901760
      %1572 = vmatpush1.msra.mxu0 %v1571
      %v1573 = vand.u32 %v167, 4294901760
      %1574 = vmatprep.subr.mxu0 %v1573
      %v1575 = vand.u32 %v166, 4294901760
      %1576 = vmatpush1.msra.mxu0 %v1575
      %v1577 = vand.u32 %v169, 4294901760
      %1578 = vmatprep.subr.mxu0 %v1577
      %v1579 = vand.u32 %v168, 4294901760
      %1580 = vmatpush1.msra.mxu0 %v1579
      %v1581 = vand.u32 %v171, 4294901760
      %1582 = vmatprep.subr.mxu0 %v1581
      %v1583 = vand.u32 %v170, 4294901760
      %1584 = vmatpush1.msra.mxu0 %v1583
      %v1585 = vand.u32 %v173, 4294901760
      %1586 = vmatprep.subr.mxu0 %v1585
      %v1587 = vand.u32 %v172, 4294901760
      %1588 = vmatpush1.msra.mxu0 %v1587
      %v1589 = vand.u32 %v175, 4294901760
      %1590 = vmatprep.subr.mxu0 %v1589
      %v1591 = vand.u32 %v174, 4294901760
      %1592 = vmatpush1.msra.mxu0 %v1591
      %v1593 = vand.u32 %v177, 4294901760
      %1594 = vmatprep.subr.mxu0 %v1593
      %v1595 = vand.u32 %v176, 4294901760
      %1596 = vmatpush1.msra.mxu0 %v1595
      %v1597 = vand.u32 %v179, 4294901760
      %1598 = vmatprep.subr.mxu0 %v1597
      %v1599 = vand.u32 %v178, 4294901760
      %1600 = vmatpush1.msra.mxu0 %v1599
      %v1601 = vand.u32 %v181, 4294901760
      %1602 = vmatprep.subr.mxu0 %v1601
      %v1603 = vand.u32 %v180, 4294901760
      %1604 = vmatpush1.msra.mxu0 %v1603
      %v1605 = vand.u32 %v183, 4294901760
      %1606 = vmatprep.subr.mxu0 %v1605
      %v1607 = vand.u32 %v182, 4294901760
      %1608 = vmatpush1.msra.mxu0 %v1607
      %v1609 = vand.u32 %v185, 4294901760
      %1610 = vmatprep.subr.mxu0 %v1609
      %v1611 = vand.u32 %v184, 4294901760
      %1612 = vmatpush1.msra.mxu0 %v1611
      %v1613 = vand.u32 %v187, 4294901760
      %1614 = vmatprep.subr.mxu0 %v1613
      %v1615 = vand.u32 %v186, 4294901760
      %1616 = vmatpush1.msra.mxu0 %v1615
      %v1617 = vand.u32 %v189, 4294901760
      %1618 = vmatprep.subr.mxu0 %v1617
      %v1619 = vand.u32 %v188, 4294901760
      %1620 = vmatpush1.msra.mxu0 %v1619
      %v1621 = vand.u32 %v191, 4294901760
      %1622 = vmatprep.subr.mxu0 %v1621
      %v1623 = vand.u32 %v190, 4294901760
      %1624 = vmatpush1.msra.mxu0 %v1623
      %v1625 = vand.u32 %v193, 4294901760
      %1626 = vmatprep.subr.mxu0 %v1625
      %v1627 = vand.u32 %v192, 4294901760
      %1628 = vmatpush1.msra.mxu0 %v1627
      %v1629 = vand.u32 %v195, 4294901760
      %1630 = vmatprep.subr.mxu0 %v1629
      %v1631 = vand.u32 %v194, 4294901760
      %1632 = vmatpush1.msra.mxu0 %v1631
      %v1633 = vand.u32 %v197, 4294901760
      %1634 = vmatprep.subr.mxu0 %v1633
      %v1635 = vand.u32 %v196, 4294901760
      %1636 = vmatpush1.msra.mxu0 %v1635
      %v1637 = vand.u32 %v199, 4294901760
      %1638 = vmatprep.subr.mxu0 %v1637
      %v1639 = vand.u32 %v198, 4294901760
      %1640 = vmatpush1.msra.mxu0 %v1639
      %v1641 = vand.u32 %v201, 4294901760
      %1642 = vmatprep.subr.mxu0 %v1641
      %v1643 = vand.u32 %v200, 4294901760
      %1644 = vmatpush1.msra.mxu0 %v1643
      %v1645 = vand.u32 %v203, 4294901760
      %1646 = vmatprep.subr.mxu0 %v1645
      %v1647 = vand.u32 %v202, 4294901760
      %1648 = vmatpush1.msra.mxu0 %v1647
      %v1649 = vand.u32 %v205, 4294901760
      %1650 = vmatprep.subr.mxu0 %v1649
      %v1651 = vand.u32 %v204, 4294901760
      %1652 = vmatpush1.msra.mxu0 %v1651
      %v1653 = vand.u32 %v207, 4294901760
      %1654 = vmatprep.subr.mxu0 %v1653
      %v1655 = vand.u32 %v206, 4294901760
      %1656 = vmatpush1.msra.mxu0 %v1655
      %v1657 = vand.u32 %v209, 4294901760
      %1658 = vmatprep.subr.mxu0 %v1657
      %v1659 = vand.u32 %v208, 4294901760
      %1660 = vmatpush1.msra.mxu0 %v1659
      %v1661 = vand.u32 %v211, 4294901760
      %1662 = vmatprep.subr.mxu0 %v1661
      %v1663 = vand.u32 %v210, 4294901760
      %1664 = vmatpush1.msra.mxu0 %v1663
      %v1665 = vand.u32 %v213, 4294901760
      %1666 = vmatprep.subr.mxu0 %v1665
      %v1667 = vand.u32 %v212, 4294901760
      %1668 = vmatpush1.msra.mxu0 %v1667
      %v1669 = vand.u32 %v215, 4294901760
      %1670 = vmatprep.subr.mxu0 %v1669
      %v1671 = vand.u32 %v214, 4294901760
      %1672 = vmatpush1.msra.mxu0 %v1671
      %v1673 = vand.u32 %v217, 4294901760
      %1674 = vmatprep.subr.mxu0 %v1673
      %v1675 = vand.u32 %v216, 4294901760
      %1676 = vmatpush1.msra.mxu0 %v1675
      %v1677 = vand.u32 %v219, 4294901760
      %1678 = vmatprep.subr.mxu0 %v1677
      %v1679 = vand.u32 %v218, 4294901760
      %1680 = vmatpush1.msra.mxu0 %v1679
      %v1681 = vand.u32 %v221, 4294901760
      %1682 = vmatprep.subr.mxu0 %v1681
      %v1683 = vand.u32 %v220, 4294901760
      %1684 = vmatpush1.msra.mxu0 %v1683
      %v1685 = vand.u32 %v223, 4294901760
      %1686 = vmatprep.subr.mxu0 %v1685
      %v1687 = vand.u32 %v222, 4294901760
      %1688 = vmatpush1.msra.mxu0 %v1687
      %v1689 = vand.u32 %v225, 4294901760
      %1690 = vmatprep.subr.mxu0 %v1689
      %v1691 = vand.u32 %v224, 4294901760
      %1692 = vmatpush1.msra.mxu0 %v1691
      %v1693 = vand.u32 %v227, 4294901760
      %1694 = vmatprep.subr.mxu0 %v1693
      %v1695 = vand.u32 %v226, 4294901760
      %1696 = vmatpush1.msra.mxu0 %v1695
      %v1697 = vand.u32 %v153, 4294901760
      %1698 = vmatprep.mubr.f32.mxu0 %v1697
      %v1699 = vand.u32 %v152, 4294901760
      %1700 = vmatmul.mubr.f32.gmra.mrb[0].mxu0 %v1699
      %v1701 = vpop.f32.mrb[0].mxu0
      %v1702 = vadd.f32 %v1541, %v1701
      %v1703 = vpop.f32.mrb[0].mxu0
      %v1704 = vadd.f32 %v1543, %v1703
      %v1705 = vand.u32 %v156, 4294901760
      %1706 = vmatprep.mubr.f32.mxu0 %v1705
      %v1707 = vand.u32 %v155, 4294901760
      %1708 = vmatmul.mubr.f32.gmra.mrb[0].mxu0 %v1707
      %v1709 = vpop.f32.mrb[0].mxu0
      %v1710 = vadd.f32 %v1549, %v1709
      %v1711 = vpop.f32.mrb[0].mxu0
      %v1712 = vadd.f32 %v1551, %v1711
      %v1713 = vand.u32 %v159, 4294901760
      %1714 = vmatprep.mubr.f32.mxu0 %v1713
      %v1715 = vand.u32 %v158, 4294901760
      %1716 = vmatmul.mubr.f32.gmra.mrb[0].mxu0 %v1715
      %v1717 = vpop.f32.mrb[0].mxu0
      %v1718 = vadd.f32 %v1557, %v1717
      %v1719 = vpop.f32.mrb[0].mxu0
      %v1720 = vadd.f32 %v1559, %v1719
      %v1721 = vand.u32 %v162, 4294901760
      %1722 = vmatprep.mubr.f32.mxu0 %v1721
      %v1723 = vand.u32 %v161, 4294901760
      %1724 = vmatmul.mubr.f32.gmra.mrb[0].mxu0 %v1723
      %v1725 = vpop.f32.mrb[0].mxu0
      %v1726 = vadd.f32 %v1565, %v1725
      %v1727 = vpop.f32.mrb[0].mxu0
      %v1728 = vadd.f32 %v1567, %v1727
      %1729 = vdwg.mxu0
      %v1730 = vand.u32 %v229, 4294901760
      %1731 = vmatprep.subr.mxu0 %v1730
      %v1732 = vand.u32 %v228, 4294901760
      %1733 = vmatpush1.msra.mxu0 %v1732
      %v1734 = vand.u32 %v231, 4294901760
      %1735 = vmatprep.subr.mxu0 %v1734
      %v1736 = vand.u32 %v230, 4294901760
      %1737 = vmatpush1.msra.mxu0 %v1736
      %v1738 = vand.u32 %v233, 4294901760
      %1739 = vmatprep.subr.mxu0 %v1738
      %v1740 = vand.u32 %v232, 4294901760
      %1741 = vmatpush1.msra.mxu0 %v1740
      %v1742 = vand.u32 %v235, 4294901760
      %1743 = vmatprep.subr.mxu0 %v1742
      %v1744 = vand.u32 %v234, 4294901760
      %1745 = vmatpush1.msra.mxu0 %v1744
      %v1746 = vand.u32 %v237, 4294901760
      %1747 = vmatprep.subr.mxu0 %v1746
      %v1748 = vand.u32 %v236, 4294901760
      %1749 = vmatpush1.msra.mxu0 %v1748
      %v1750 = vand.u32 %v239, 4294901760
      %1751 = vmatprep.subr.mxu0 %v1750
      %v1752 = vand.u32 %v238, 4294901760
      %1753 = vmatpush1.msra.mxu0 %v1752
      %v1754 = vand.u32 %v241, 4294901760
      %1755 = vmatprep.subr.mxu0 %v1754
      %v1756 = vand.u32 %v240, 4294901760
      %1757 = vmatpush1.msra.mxu0 %v1756
      %v1758 = vand.u32 %v243, 4294901760
      %1759 = vmatprep.subr.mxu0 %v1758
      %v1760 = vand.u32 %v242, 4294901760
      %1761 = vmatpush1.msra.mxu0 %v1760
      %v1762 = vand.u32 %v245, 4294901760
      %1763 = vmatprep.subr.mxu0 %v1762
      %v1764 = vand.u32 %v244, 4294901760
      %1765 = vmatpush1.msra.mxu0 %v1764
      %v1766 = vand.u32 %v247, 4294901760
      %1767 = vmatprep.subr.mxu0 %v1766
      %v1768 = vand.u32 %v246, 4294901760
      %1769 = vmatpush1.msra.mxu0 %v1768
      %v1770 = vand.u32 %v249, 4294901760
      %1771 = vmatprep.subr.mxu0 %v1770
      %v1772 = vand.u32 %v248, 4294901760
      %1773 = vmatpush1.msra.mxu0 %v1772
      %v1774 = vand.u32 %v251, 4294901760
      %1775 = vmatprep.subr.mxu0 %v1774
      %v1776 = vand.u32 %v250, 4294901760
      %1777 = vmatpush1.msra.mxu0 %v1776
      %v1778 = vand.u32 %v253, 4294901760
      %1779 = vmatprep.subr.mxu0 %v1778
      %v1780 = vand.u32 %v252, 4294901760
      %1781 = vmatpush1.msra.mxu0 %v1780
      %v1782 = vand.u32 %v255, 4294901760
      %1783 = vmatprep.subr.mxu0 %v1782
      %v1784 = vand.u32 %v254, 4294901760
      %1785 = vmatpush1.msra.mxu0 %v1784
      %v1786 = vand.u32 %v257, 4294901760
      %1787 = vmatprep.subr.mxu0 %v1786
      %v1788 = vand.u32 %v256, 4294901760
      %1789 = vmatpush1.msra.mxu0 %v1788
      %v1790 = vand.u32 %v259, 4294901760
      %1791 = vmatprep.subr.mxu0 %v1790
      %v1792 = vand.u32 %v258, 4294901760
      %1793 = vmatpush1.msra.mxu0 %v1792
      %1794 = vmatprep.subr.mxu0 0.0
      %1795 = vmatpush1.msra.mxu0 0.0
      %1796 = vmatprep.subr.mxu0 0.0
      %1797 = vmatpush1.msra.mxu0 0.0
      %1798 = vmatprep.subr.mxu0 0.0
      %1799 = vmatpush1.msra.mxu0 0.0
      %1800 = vmatprep.subr.mxu0 0.0
      %1801 = vmatpush1.msra.mxu0 0.0
      %1802 = vmatprep.subr.mxu0 0.0
      %1803 = vmatpush1.msra.mxu0 0.0
      %1804 = vmatprep.subr.mxu0 0.0
      %1805 = vmatpush1.msra.mxu0 0.0
      %1806 = vmatprep.subr.mxu0 0.0
      %1807 = vmatpush1.msra.mxu0 0.0
      %1808 = vmatprep.subr.mxu0 0.0
      %1809 = vmatpush1.msra.mxu0 0.0
      %1810 = vmatprep.subr.mxu0 0.0
      %1811 = vmatpush1.msra.mxu0 0.0
      %1812 = vmatprep.subr.mxu0 0.0
      %1813 = vmatpush1.msra.mxu0 0.0
      %1814 = vmatprep.subr.mxu0 0.0
      %1815 = vmatpush1.msra.mxu0 0.0
      %1816 = vmatprep.subr.mxu0 0.0
      %1817 = vmatpush1.msra.mxu0 0.0
      %1818 = vmatprep.subr.mxu0 0.0
      %1819 = vmatpush1.msra.mxu0 0.0
      %1820 = vmatprep.subr.mxu0 0.0
      %1821 = vmatpush1.msra.mxu0 0.0
      %1822 = vmatprep.subr.mxu0 0.0
      %1823 = vmatpush1.msra.mxu0 0.0
      %1824 = vmatprep.subr.mxu0 0.0
      %1825 = vmatpush1.msra.mxu0 0.0
      %1826 = vmatprep.mubr.f32.mxu0 0.0
      %v1827 = vand.u32 %v154, 4294901760
      %v1828 = vsub.f32 %v154, %v1827
      %v1829 = vand.u32 %v1828, 4294901760
      %v1830 = vsub.f32 %v1828, %v1829
      %v1831 = vand.u32 %v1830, 4294901760
      %1832 = vmatmul.mubr.f32.gmra.mrb[0].mxu0 %v1831
      %v1833 = vpop.f32.mrb[0].mxu0
      %v1834 = vadd.f32 %v1702, %v1833
      %v1835 = vpop.f32.mrb[0].mxu0
      %v1836 = vadd.f32 %v1704, %v1835
      %1837 = vmatprep.mubr.f32.mxu0 0.0
      %v1838 = vand.u32 %v157, 4294901760
      %v1839 = vsub.f32 %v157, %v1838
      %v1840 = vand.u32 %v1839, 4294901760
      %v1841 = vsub.f32 %v1839, %v1840
      %v1842 = vand.u32 %v1841, 4294901760
      %1843 = vmatmul.mubr.f32.gmra.mrb[0].mxu0 %v1842
      %v1844 = vpop.f32.mrb[0].mxu0
      %v1845 = vadd.f32 %v1710, %v1844
      %v1846 = vpop.f32.mrb[0].mxu0
      %v1847 = vadd.f32 %v1712, %v1846
      %1848 = vmatprep.mubr.f32.mxu0 0.0
      %v1849 = vand.u32 %v160, 4294901760
      %v1850 = vsub.f32 %v160, %v1849
      %v1851 = vand.u32 %v1850, 4294901760
      %v1852 = vsub.f32 %v1850, %v1851
      %v1853 = vand.u32 %v1852, 4294901760
      %1854 = vmatmul.mubr.f32.gmra.mrb[0].mxu0 %v1853
      %v1855 = vpop.f32.mrb[0].mxu0
      %v1856 = vadd.f32 %v1718, %v1855
      %v1857 = vpop.f32.mrb[0].mxu0
      %v1858 = vadd.f32 %v1720, %v1857
      %1859 = vmatprep.mubr.f32.mxu0 0.0
      %v1860 = vand.u32 %v163, 4294901760
      %v1861 = vsub.f32 %v163, %v1860
      %v1862 = vand.u32 %v1861, 4294901760
      %v1863 = vsub.f32 %v1861, %v1862
      %v1864 = vand.u32 %v1863, 4294901760
      %1865 = vmatmul.mubr.f32.gmra.mrb[0].mxu0 %v1864
      %v1866 = vpop.f32.mrb[0].mxu0
      %v1867 = vadd.f32 %v1726, %v1866
      %v1868 = vpop.f32.mrb[0].mxu0
      %v1869 = vadd.f32 %v1728, %v1868
      %1870 = vdwg.mxu0
      %v1871 = vand.u32 %v229, 4294901760
      %v1872 = vsub.f32 %v229, %v1871
      %v1873 = vand.u32 %v1872, 4294901760
      %v1874 = vsub.f32 %v1872, %v1873
      %v1875 = vand.u32 %v1874, 4294901760
      %1876 = vmatprep.subr.mxu0 %v1875
      %v1877 = vand.u32 %v228, 4294901760
      %v1878 = vsub.f32 %v228, %v1877
      %v1879 = vand.u32 %v1878, 4294901760
      %v1880 = vsub.f32 %v1878, %v1879
      %v1881 = vand.u32 %v1880, 4294901760
      %1882 = vmatpush1.msra.mxu0 %v1881
      %v1883 = vand.u32 %v231, 4294901760
      %v1884 = vsub.f32 %v231, %v1883
      %v1885 = vand.u32 %v1884, 4294901760
      %v1886 = vsub.f32 %v1884, %v1885
      %v1887 = vand.u32 %v1886, 4294901760
      %1888 = vmatprep.subr.mxu0 %v1887
      %v1889 = vand.u32 %v230, 4294901760
      %v1890 = vsub.f32 %v230, %v1889
      %v1891 = vand.u32 %v1890, 4294901760
      %v1892 = vsub.f32 %v1890, %v1891
      %v1893 = vand.u32 %v1892, 4294901760
      %1894 = vmatpush1.msra.mxu0 %v1893
      %v1895 = vand.u32 %v233, 4294901760
      %v1896 = vsub.f32 %v233, %v1895
      %v1897 = vand.u32 %v1896, 4294901760
      %v1898 = vsub.f32 %v1896, %v1897
      %v1899 = vand.u32 %v1898, 4294901760
      %1900 = vmatprep.subr.mxu0 %v1899
      %v1901 = vand.u32 %v232, 4294901760
      %v1902 = vsub.f32 %v232, %v1901
      %v1903 = vand.u32 %v1902, 4294901760
      %v1904 = vsub.f32 %v1902, %v1903
      %v1905 = vand.u32 %v1904, 4294901760
      %1906 = vmatpush1.msra.mxu0 %v1905
      %v1907 = vand.u32 %v235, 4294901760
      %v1908 = vsub.f32 %v235, %v1907
      %v1909 = vand.u32 %v1908, 4294901760
      %v1910 = vsub.f32 %v1908, %v1909
      %v1911 = vand.u32 %v1910, 4294901760
      %1912 = vmatprep.subr.mxu0 %v1911
      %v1913 = vand.u32 %v234, 4294901760
      %v1914 = vsub.f32 %v234, %v1913
      %v1915 = vand.u32 %v1914, 4294901760
      %v1916 = vsub.f32 %v1914, %v1915
      %v1917 = vand.u32 %v1916, 4294901760
      %1918 = vmatpush1.msra.mxu0 %v1917
      %v1919 = vand.u32 %v237, 4294901760
      %v1920 = vsub.f32 %v237, %v1919
      %v1921 = vand.u32 %v1920, 4294901760
      %v1922 = vsub.f32 %v1920, %v1921
      %v1923 = vand.u32 %v1922, 4294901760
      %1924 = vmatprep.subr.mxu0 %v1923
      %v1925 = vand.u32 %v236, 4294901760
      %v1926 = vsub.f32 %v236, %v1925
      %v1927 = vand.u32 %v1926, 4294901760
      %v1928 = vsub.f32 %v1926, %v1927
      %v1929 = vand.u32 %v1928, 4294901760
      %1930 = vmatpush1.msra.mxu0 %v1929
      %v1931 = vand.u32 %v239, 4294901760
      %v1932 = vsub.f32 %v239, %v1931
      %v1933 = vand.u32 %v1932, 4294901760
      %v1934 = vsub.f32 %v1932, %v1933
      %v1935 = vand.u32 %v1934, 4294901760
      %1936 = vmatprep.subr.mxu0 %v1935
      %v1937 = vand.u32 %v238, 4294901760
      %v1938 = vsub.f32 %v238, %v1937
      %v1939 = vand.u32 %v1938, 4294901760
      %v1940 = vsub.f32 %v1938, %v1939
      %v1941 = vand.u32 %v1940, 4294901760
      %1942 = vmatpush1.msra.mxu0 %v1941
      %v1943 = vand.u32 %v241, 4294901760
      %v1944 = vsub.f32 %v241, %v1943
      %v1945 = vand.u32 %v1944, 4294901760
      %v1946 = vsub.f32 %v1944, %v1945
      %v1947 = vand.u32 %v1946, 4294901760
      %1948 = vmatprep.subr.mxu0 %v1947
      %v1949 = vand.u32 %v240, 4294901760
      %v1950 = vsub.f32 %v240, %v1949
      %v1951 = vand.u32 %v1950, 4294901760
      %v1952 = vsub.f32 %v1950, %v1951
      %v1953 = vand.u32 %v1952, 4294901760
      %1954 = vmatpush1.msra.mxu0 %v1953
      %v1955 = vand.u32 %v243, 4294901760
      %v1956 = vsub.f32 %v243, %v1955
      %v1957 = vand.u32 %v1956, 4294901760
      %v1958 = vsub.f32 %v1956, %v1957
      %v1959 = vand.u32 %v1958, 4294901760
      %1960 = vmatprep.subr.mxu0 %v1959
      %v1961 = vand.u32 %v242, 4294901760
      %v1962 = vsub.f32 %v242, %v1961
      %v1963 = vand.u32 %v1962, 4294901760
      %v1964 = vsub.f32 %v1962, %v1963
      %v1965 = vand.u32 %v1964, 4294901760
      %1966 = vmatpush1.msra.mxu0 %v1965
      %v1967 = vand.u32 %v245, 4294901760
      %v1968 = vsub.f32 %v245, %v1967
      %v1969 = vand.u32 %v1968, 4294901760
      %v1970 = vsub.f32 %v1968, %v1969
      %v1971 = vand.u32 %v1970, 4294901760
      %1972 = vmatprep.subr.mxu0 %v1971
      %v1973 = vand.u32 %v244, 4294901760
      %v1974 = vsub.f32 %v244, %v1973
      %v1975 = vand.u32 %v1974, 4294901760
      %v1976 = vsub.f32 %v1974, %v1975
      %v1977 = vand.u32 %v1976, 4294901760
      %1978 = vmatpush1.msra.mxu0 %v1977
      %v1979 = vand.u32 %v247, 4294901760
      %v1980 = vsub.f32 %v247, %v1979
      %v1981 = vand.u32 %v1980, 4294901760
      %v1982 = vsub.f32 %v1980, %v1981
      %v1983 = vand.u32 %v1982, 4294901760
      %1984 = vmatprep.subr.mxu0 %v1983
      %v1985 = vand.u32 %v246, 4294901760
      %v1986 = vsub.f32 %v246, %v1985
      %v1987 = vand.u32 %v1986, 4294901760
      %v1988 = vsub.f32 %v1986, %v1987
      %v1989 = vand.u32 %v1988, 4294901760
      %1990 = vmatpush1.msra.mxu0 %v1989
      %v1991 = vand.u32 %v249, 4294901760
      %v1992 = vsub.f32 %v249, %v1991
      %v1993 = vand.u32 %v1992, 4294901760
      %v1994 = vsub.f32 %v1992, %v1993
      %v1995 = vand.u32 %v1994, 4294901760
      %1996 = vmatprep.subr.mxu0 %v1995
      %v1997 = vand.u32 %v248, 4294901760
      %v1998 = vsub.f32 %v248, %v1997
      %v1999 = vand.u32 %v1998, 4294901760
      %v2000 = vsub.f32 %v1998, %v1999
      %v2001 = vand.u32 %v2000, 4294901760
      %2002 = vmatpush1.msra.mxu0 %v2001
      %v2003 = vand.u32 %v251, 4294901760
      %v2004 = vsub.f32 %v251, %v2003
      %v2005 = vand.u32 %v2004, 4294901760
      %v2006 = vsub.f32 %v2004, %v2005
      %v2007 = vand.u32 %v2006, 4294901760
      %2008 = vmatprep.subr.mxu0 %v2007
      %v2009 = vand.u32 %v250, 4294901760
      %v2010 = vsub.f32 %v250, %v2009
      %v2011 = vand.u32 %v2010, 4294901760
      %v2012 = vsub.f32 %v2010, %v2011
      %v2013 = vand.u32 %v2012, 4294901760
      %2014 = vmatpush1.msra.mxu0 %v2013
      %v2015 = vand.u32 %v253, 4294901760
      %v2016 = vsub.f32 %v253, %v2015
      %v2017 = vand.u32 %v2016, 4294901760
      %v2018 = vsub.f32 %v2016, %v2017
      %v2019 = vand.u32 %v2018, 4294901760
      %2020 = vmatprep.subr.mxu0 %v2019
      %v2021 = vand.u32 %v252, 4294901760
      %v2022 = vsub.f32 %v252, %v2021
      %v2023 = vand.u32 %v2022, 4294901760
      %v2024 = vsub.f32 %v2022, %v2023
      %v2025 = vand.u32 %v2024, 4294901760
      %2026 = vmatpush1.msra.mxu0 %v2025
      %v2027 = vand.u32 %v255, 4294901760
      %v2028 = vsub.f32 %v255, %v2027
      %v2029 = vand.u32 %v2028, 4294901760
      %v2030 = vsub.f32 %v2028, %v2029
      %v2031 = vand.u32 %v2030, 4294901760
      %2032 = vmatprep.subr.mxu0 %v2031
      %v2033 = vand.u32 %v254, 4294901760
      %v2034 = vsub.f32 %v254, %v2033
      %v2035 = vand.u32 %v2034, 4294901760
      %v2036 = vsub.f32 %v2034, %v2035
      %v2037 = vand.u32 %v2036, 4294901760
      %2038 = vmatpush1.msra.mxu0 %v2037
      %v2039 = vand.u32 %v257, 4294901760
      %v2040 = vsub.f32 %v257, %v2039
      %v2041 = vand.u32 %v2040, 4294901760
      %v2042 = vsub.f32 %v2040, %v2041
      %v2043 = vand.u32 %v2042, 4294901760
      %2044 = vmatprep.subr.mxu0 %v2043
      %v2045 = vand.u32 %v256, 4294901760
      %v2046 = vsub.f32 %v256, %v2045
      %v2047 = vand.u32 %v2046, 4294901760
      %v2048 = vsub.f32 %v2046, %v2047
      %v2049 = vand.u32 %v2048, 4294901760
      %2050 = vmatpush1.msra.mxu0 %v2049
      %v2051 = vand.u32 %v259, 4294901760
      %v2052 = vsub.f32 %v259, %v2051
      %v2053 = vand.u32 %v2052, 4294901760
      %v2054 = vsub.f32 %v2052, %v2053
      %v2055 = vand.u32 %v2054, 4294901760
      %2056 = vmatprep.subr.mxu0 %v2055
      %v2057 = vand.u32 %v258, 4294901760
      %v2058 = vsub.f32 %v258, %v2057
      %v2059 = vand.u32 %v2058, 4294901760
      %v2060 = vsub.f32 %v2058, %v2059
      %v2061 = vand.u32 %v2060, 4294901760
      %2062 = vmatpush1.msra.mxu0 %v2061
      %2063 = vmatprep.subr.mxu0 0.0
      %2064 = vmatpush1.msra.mxu0 0.0
      %2065 = vmatprep.subr.mxu0 0.0
      %2066 = vmatpush1.msra.mxu0 0.0
      %2067 = vmatprep.subr.mxu0 0.0
      %2068 = vmatpush1.msra.mxu0 0.0
      %2069 = vmatprep.subr.mxu0 0.0
      %2070 = vmatpush1.msra.mxu0 0.0
      %2071 = vmatprep.subr.mxu0 0.0
      %2072 = vmatpush1.msra.mxu0 0.0
      %2073 = vmatprep.subr.mxu0 0.0
      %2074 = vmatpush1.msra.mxu0 0.0
      %2075 = vmatprep.subr.mxu0 0.0
      %2076 = vmatpush1.msra.mxu0 0.0
      %2077 = vmatprep.subr.mxu0 0.0
      %2078 = vmatpush1.msra.mxu0 0.0
      %2079 = vmatprep.subr.mxu0 0.0
      %2080 = vmatpush1.msra.mxu0 0.0
      %2081 = vmatprep.subr.mxu0 0.0
      %2082 = vmatpush1.msra.mxu0 0.0
      %2083 = vmatprep.subr.mxu0 0.0
      %2084 = vmatpush1.msra.mxu0 0.0
      %2085 = vmatprep.subr.mxu0 0.0
      %2086 = vmatpush1.msra.mxu0 0.0
      %2087 = vmatprep.subr.mxu0 0.0
      %2088 = vmatpush1.msra.mxu0 0.0
      %2089 = vmatprep.subr.mxu0 0.0
      %2090 = vmatpush1.msra.mxu0 0.0
      %2091 = vmatprep.subr.mxu0 0.0
      %2092 = vmatpush1.msra.mxu0 0.0
      %2093 = vmatprep.subr.mxu0 0.0
      %2094 = vmatpush1.msra.mxu0 0.0
      %2095 = vmatprep.mubr.f32.mxu0 0.0
      %v2096 = vand.u32 %v154, 4294901760
      %2097 = vmatmul.mubr.f32.gmra.mrb[0].mxu0 %v2096
      %v2098 = vpop.f32.mrb[0].mxu0
      %v2099 = vadd.f32 %v1834, %v2098
      %v2100 = vpop.f32.mrb[0].mxu0
      %v2101 = vadd.f32 %v1836, %v2100
      %2102 = vmatprep.mubr.f32.mxu0 0.0
      %v2103 = vand.u32 %v157, 4294901760
      %2104 = vmatmul.mubr.f32.gmra.mrb[0].mxu0 %v2103
      %v2105 = vpop.f32.mrb[0].mxu0
      %v2106 = vadd.f32 %v1845, %v2105
      %v2107 = vpop.f32.mrb[0].mxu0
      %v2108 = vadd.f32 %v1847, %v2107
      %2109 = vmatprep.mubr.f32.mxu0 0.0
      %v2110 = vand.u32 %v160, 4294901760
      %2111 = vmatmul.mubr.f32.gmra.mrb[0].mxu0 %v2110
      %v2112 = vpop.f32.mrb[0].mxu0
      %v2113 = vadd.f32 %v1856, %v2112
      %v2114 = vpop.f32.mrb[0].mxu0
      %v2115 = vadd.f32 %v1858, %v2114
      %2116 = vmatprep.mubr.f32.mxu0 0.0
      %v2117 = vand.u32 %v163, 4294901760
      %2118 = vmatmul.mubr.f32.gmra.mrb[0].mxu0 %v2117
      %v2119 = vpop.f32.mrb[0].mxu0
      %v2120 = vadd.f32 %v1867, %v2119
      %v2121 = vpop.f32.mrb[0].mxu0
      %v2122 = vadd.f32 %v1869, %v2121
      %2123 = vdwg.mxu0
      %v2124 = vand.u32 %v229, 4294901760
      %v2125 = vsub.f32 %v229, %v2124
      %2126 = vmatprep.subr.mxu0 %v2125
      %v2127 = vand.u32 %v228, 4294901760
      %v2128 = vsub.f32 %v228, %v2127
      %2129 = vmatpush1.msra.mxu0 %v2128
      %v2130 = vand.u32 %v231, 4294901760
      %v2131 = vsub.f32 %v231, %v2130
      %2132 = vmatprep.subr.mxu0 %v2131
      %v2133 = vand.u32 %v230, 4294901760
      %v2134 = vsub.f32 %v230, %v2133
      %2135 = vmatpush1.msra.mxu0 %v2134
      %v2136 = vand.u32 %v233, 4294901760
      %v2137 = vsub.f32 %v233, %v2136
      %2138 = vmatprep.subr.mxu0 %v2137
      %v2139 = vand.u32 %v232, 4294901760
      %v2140 = vsub.f32 %v232, %v2139
      %2141 = vmatpush1.msra.mxu0 %v2140
      %v2142 = vand.u32 %v235, 4294901760
      %v2143 = vsub.f32 %v235, %v2142
      %2144 = vmatprep.subr.mxu0 %v2143
      %v2145 = vand.u32 %v234, 4294901760
      %v2146 = vsub.f32 %v234, %v2145
      %2147 = vmatpush1.msra.mxu0 %v2146
      %v2148 = vand.u32 %v237, 4294901760
      %v2149 = vsub.f32 %v237, %v2148
      %2150 = vmatprep.subr.mxu0 %v2149
      %v2151 = vand.u32 %v236, 4294901760
      %v2152 = vsub.f32 %v236, %v2151
      %2153 = vmatpush1.msra.mxu0 %v2152
      %v2154 = vand.u32 %v239, 4294901760
      %v2155 = vsub.f32 %v239, %v2154
      %2156 = vmatprep.subr.mxu0 %v2155
      %v2157 = vand.u32 %v238, 4294901760
      %v2158 = vsub.f32 %v238, %v2157
      %2159 = vmatpush1.msra.mxu0 %v2158
      %v2160 = vand.u32 %v241, 4294901760
      %v2161 = vsub.f32 %v241, %v2160
      %2162 = vmatprep.subr.mxu0 %v2161
      %v2163 = vand.u32 %v240, 4294901760
      %v2164 = vsub.f32 %v240, %v2163
      %2165 = vmatpush1.msra.mxu0 %v2164
      %v2166 = vand.u32 %v243, 4294901760
      %v2167 = vsub.f32 %v243, %v2166
      %2168 = vmatprep.subr.mxu0 %v2167
      %v2169 = vand.u32 %v242, 4294901760
      %v2170 = vsub.f32 %v242, %v2169
      %2171 = vmatpush1.msra.mxu0 %v2170
      %v2172 = vand.u32 %v245, 4294901760
      %v2173 = vsub.f32 %v245, %v2172
      %2174 = vmatprep.subr.mxu0 %v2173
      %v2175 = vand.u32 %v244, 4294901760
      %v2176 = vsub.f32 %v244, %v2175
      %2177 = vmatpush1.msra.mxu0 %v2176
      %v2178 = vand.u32 %v247, 4294901760
      %v2179 = vsub.f32 %v247, %v2178
      %2180 = vmatprep.subr.mxu0 %v2179
      %v2181 = vand.u32 %v246, 4294901760
      %v2182 = vsub.f32 %v246, %v2181
      %2183 = vmatpush1.msra.mxu0 %v2182
      %v2184 = vand.u32 %v249, 4294901760
      %v2185 = vsub.f32 %v249, %v2184
      %2186 = vmatprep.subr.mxu0 %v2185
      %v2187 = vand.u32 %v248, 4294901760
      %v2188 = vsub.f32 %v248, %v2187
      %2189 = vmatpush1.msra.mxu0 %v2188
      %v2190 = vand.u32 %v251, 4294901760
      %v2191 = vsub.f32 %v251, %v2190
      %2192 = vmatprep.subr.mxu0 %v2191
      %v2193 = vand.u32 %v250, 4294901760
      %v2194 = vsub.f32 %v250, %v2193
      %2195 = vmatpush1.msra.mxu0 %v2194
      %v2196 = vand.u32 %v253, 4294901760
      %v2197 = vsub.f32 %v253, %v2196
      %2198 = vmatprep.subr.mxu0 %v2197
      %v2199 = vand.u32 %v252, 4294901760
      %v2200 = vsub.f32 %v252, %v2199
      %2201 = vmatpush1.msra.mxu0 %v2200
      %v2202 = vand.u32 %v255, 4294901760
      %v2203 = vsub.f32 %v255, %v2202
      %2204 = vmatprep.subr.mxu0 %v2203
      %v2205 = vand.u32 %v254, 4294901760
      %v2206 = vsub.f32 %v254, %v2205
      %2207 = vmatpush1.msra.mxu0 %v2206
      %v2208 = vand.u32 %v257, 4294901760
      %v2209 = vsub.f32 %v257, %v2208
      %2210 = vmatprep.subr.mxu0 %v2209
      %v2211 = vand.u32 %v256, 4294901760
      %v2212 = vsub.f32 %v256, %v2211
      %2213 = vmatpush1.msra.mxu0 %v2212
      %v2214 = vand.u32 %v259, 4294901760
      %v2215 = vsub.f32 %v259, %v2214
      %2216 = vmatprep.subr.mxu0 %v2215
      %v2217 = vand.u32 %v258, 4294901760
      %v2218 = vsub.f32 %v258, %v2217
      %2219 = vmatpush1.msra.mxu0 %v2218
      %2220 = vmatprep.subr.mxu0 0.0
      %2221 = vmatpush1.msra.mxu0 0.0
      %2222 = vmatprep.subr.mxu0 0.0
      %2223 = vmatpush1.msra.mxu0 0.0
      %2224 = vmatprep.subr.mxu0 0.0
      %2225 = vmatpush1.msra.mxu0 0.0
      %2226 = vmatprep.subr.mxu0 0.0
      %2227 = vmatpush1.msra.mxu0 0.0
      %2228 = vmatprep.subr.mxu0 0.0
      %2229 = vmatpush1.msra.mxu0 0.0
      %2230 = vmatprep.subr.mxu0 0.0
      %2231 = vmatpush1.msra.mxu0 0.0
      %2232 = vmatprep.subr.mxu0 0.0
      %2233 = vmatpush1.msra.mxu0 0.0
      %2234 = vmatprep.subr.mxu0 0.0
      %2235 = vmatpush1.msra.mxu0 0.0
      %2236 = vmatprep.subr.mxu0 0.0
      %2237 = vmatpush1.msra.mxu0 0.0
      %2238 = vmatprep.subr.mxu0 0.0
      %2239 = vmatpush1.msra.mxu0 0.0
      %2240 = vmatprep.subr.mxu0 0.0
      %2241 = vmatpush1.msra.mxu0 0.0
      %2242 = vmatprep.subr.mxu0 0.0
      %2243 = vmatpush1.msra.mxu0 0.0
      %2244 = vmatprep.subr.mxu0 0.0
      %2245 = vmatpush1.msra.mxu0 0.0
      %2246 = vmatprep.subr.mxu0 0.0
      %2247 = vmatpush1.msra.mxu0 0.0
      %2248 = vmatprep.subr.mxu0 0.0
      %2249 = vmatpush1.msra.mxu0 0.0
      %2250 = vmatprep.subr.mxu0 0.0
      %2251 = vmatpush1.msra.mxu0 0.0
      %2252 = vmatprep.mubr.f32.mxu0 0.0
      %v2253 = vand.u32 %v154, 4294901760
      %v2254 = vsub.f32 %v154, %v2253
      %2255 = vmatmul.mubr.f32.gmra.mrb[0].mxu0 %v2254
      %v2256 = vpop.f32.mrb[0].mxu0
      %v2257 = vadd.f32 %v2099, %v2256
      %v2258 = vpop.f32.mrb[0].mxu0
      %v2259 = vadd.f32 %v2101, %v2258
      %2260 = vmatprep.mubr.f32.mxu0 0.0
      %v2261 = vand.u32 %v157, 4294901760
      %v2262 = vsub.f32 %v157, %v2261
      %2263 = vmatmul.mubr.f32.gmra.mrb[0].mxu0 %v2262
      %v2264 = vpop.f32.mrb[0].mxu0
      %v2265 = vadd.f32 %v2106, %v2264
      %v2266 = vpop.f32.mrb[0].mxu0
      %v2267 = vadd.f32 %v2108, %v2266
      %2268 = vmatprep.mubr.f32.mxu0 0.0
      %v2269 = vand.u32 %v160, 4294901760
      %v2270 = vsub.f32 %v160, %v2269
      %2271 = vmatmul.mubr.f32.gmra.mrb[0].mxu0 %v2270
      %v2272 = vpop.f32.mrb[0].mxu0
      %v2273 = vadd.f32 %v2113, %v2272
      %v2274 = vpop.f32.mrb[0].mxu0
      %v2275 = vadd.f32 %v2115, %v2274
      %2276 = vmatprep.mubr.f32.mxu0 0.0
      %v2277 = vand.u32 %v163, 4294901760
      %v2278 = vsub.f32 %v163, %v2277
      %2279 = vmatmul.mubr.f32.gmra.mrb[0].mxu0 %v2278
      %v2280 = vpop.f32.mrb[0].mxu0
      %v2281 = vadd.f32 %v2120, %v2280
      %v2282 = vpop.f32.mrb[0].mxu0
      %v2283 = vadd.f32 %v2122, %v2282
      %2284 = vdwg.mxu0
      %v2285 = vand.u32 %v229, 4294901760
      %2286 = vmatprep.subr.mxu0 %v2285
      %v2287 = vand.u32 %v228, 4294901760
      %2288 = vmatpush1.msra.mxu0 %v2287
      %v2289 = vand.u32 %v231, 4294901760
      %2290 = vmatprep.subr.mxu0 %v2289
      %v2291 = vand.u32 %v230, 4294901760
      %2292 = vmatpush1.msra.mxu0 %v2291
      %v2293 = vand.u32 %v233, 4294901760
      %2294 = vmatprep.subr.mxu0 %v2293
      %v2295 = vand.u32 %v232, 4294901760
      %2296 = vmatpush1.msra.mxu0 %v2295
      %v2297 = vand.u32 %v235, 4294901760
      %2298 = vmatprep.subr.mxu0 %v2297
      %v2299 = vand.u32 %v234, 4294901760
      %2300 = vmatpush1.msra.mxu0 %v2299
      %v2301 = vand.u32 %v237, 4294901760
      %2302 = vmatprep.subr.mxu0 %v2301
      %v2303 = vand.u32 %v236, 4294901760
      %2304 = vmatpush1.msra.mxu0 %v2303
      %v2305 = vand.u32 %v239, 4294901760
      %2306 = vmatprep.subr.mxu0 %v2305
      %v2307 = vand.u32 %v238, 4294901760
      %2308 = vmatpush1.msra.mxu0 %v2307
      %v2309 = vand.u32 %v241, 4294901760
      %2310 = vmatprep.subr.mxu0 %v2309
      %v2311 = vand.u32 %v240, 4294901760
      %2312 = vmatpush1.msra.mxu0 %v2311
      %v2313 = vand.u32 %v243, 4294901760
      %2314 = vmatprep.subr.mxu0 %v2313
      %v2315 = vand.u32 %v242, 4294901760
      %2316 = vmatpush1.msra.mxu0 %v2315
      %v2317 = vand.u32 %v245, 4294901760
      %2318 = vmatprep.subr.mxu0 %v2317
      %v2319 = vand.u32 %v244, 4294901760
      %2320 = vmatpush1.msra.mxu0 %v2319
      %v2321 = vand.u32 %v247, 4294901760
      %2322 = vmatprep.subr.mxu0 %v2321
      %v2323 = vand.u32 %v246, 4294901760
      %2324 = vmatpush1.msra.mxu0 %v2323
      %v2325 = vand.u32 %v249, 4294901760
      %2326 = vmatprep.subr.mxu0 %v2325
      %v2327 = vand.u32 %v248, 4294901760
      %2328 = vmatpush1.msra.mxu0 %v2327
      %v2329 = vand.u32 %v251, 4294901760
      %2330 = vmatprep.subr.mxu0 %v2329
      %v2331 = vand.u32 %v250, 4294901760
      %2332 = vmatpush1.msra.mxu0 %v2331
      %v2333 = vand.u32 %v253, 4294901760
      %2334 = vmatprep.subr.mxu0 %v2333
      %v2335 = vand.u32 %v252, 4294901760
      %2336 = vmatpush1.msra.mxu0 %v2335
      %v2337 = vand.u32 %v255, 4294901760
      %2338 = vmatprep.subr.mxu0 %v2337
      %v2339 = vand.u32 %v254, 4294901760
      %2340 = vmatpush1.msra.mxu0 %v2339
      %v2341 = vand.u32 %v257, 4294901760
      %2342 = vmatprep.subr.mxu0 %v2341
      %v2343 = vand.u32 %v256, 4294901760
      %2344 = vmatpush1.msra.mxu0 %v2343
      %v2345 = vand.u32 %v259, 4294901760
      %2346 = vmatprep.subr.mxu0 %v2345
      %v2347 = vand.u32 %v258, 4294901760
      %2348 = vmatpush1.msra.mxu0 %v2347
      %2349 = vmatprep.subr.mxu0 0.0
      %2350 = vmatpush1.msra.mxu0 0.0
      %2351 = vmatprep.subr.mxu0 0.0
      %2352 = vmatpush1.msra.mxu0 0.0
      %2353 = vmatprep.subr.mxu0 0.0
      %2354 = vmatpush1.msra.mxu0 0.0
      %2355 = vmatprep.subr.mxu0 0.0
      %2356 = vmatpush1.msra.mxu0 0.0
      %2357 = vmatprep.subr.mxu0 0.0
      %2358 = vmatpush1.msra.mxu0 0.0
      %2359 = vmatprep.subr.mxu0 0.0
      %2360 = vmatpush1.msra.mxu0 0.0
      %2361 = vmatprep.subr.mxu0 0.0
      %2362 = vmatpush1.msra.mxu0 0.0
      %2363 = vmatprep.subr.mxu0 0.0
      %2364 = vmatpush1.msra.mxu0 0.0
      %2365 = vmatprep.subr.mxu0 0.0
      %2366 = vmatpush1.msra.mxu0 0.0
      %2367 = vmatprep.subr.mxu0 0.0
      %2368 = vmatpush1.msra.mxu0 0.0
      %2369 = vmatprep.subr.mxu0 0.0
      %2370 = vmatpush1.msra.mxu0 0.0
      %2371 = vmatprep.subr.mxu0 0.0
      %2372 = vmatpush1.msra.mxu0 0.0
      %2373 = vmatprep.subr.mxu0 0.0
      %2374 = vmatpush1.msra.mxu0 0.0
      %2375 = vmatprep.subr.mxu0 0.0
      %2376 = vmatpush1.msra.mxu0 0.0
      %2377 = vmatprep.subr.mxu0 0.0
      %2378 = vmatpush1.msra.mxu0 0.0
      %2379 = vmatprep.subr.mxu0 0.0
      %2380 = vmatpush1.msra.mxu0 0.0
      %2381 = vmatprep.mubr.f32.mxu0 0.0
      %v2382 = vand.u32 %v154, 4294901760
      %v2383 = vsub.f32 %v154, %v2382
      %v2384 = vand.u32 %v2383, 4294901760
      %2385 = vmatmul.mubr.f32.gmra.mrb[0].mxu0 %v2384
      %v2386 = vpop.f32.mrb[0].mxu0
      %v2387 = vadd.f32 %v2257, %v2386
      %v2388 = vpop.f32.mrb[0].mxu0
      %v2389 = vadd.f32 %v2259, %v2388
      %2390 = vmatprep.mubr.f32.mxu0 0.0
      %v2391 = vand.u32 %v157, 4294901760
      %v2392 = vsub.f32 %v157, %v2391
      %v2393 = vand.u32 %v2392, 4294901760
      %2394 = vmatmul.mubr.f32.gmra.mrb[0].mxu0 %v2393
      %v2395 = vpop.f32.mrb[0].mxu0
      %v2396 = vadd.f32 %v2265, %v2395
      %v2397 = vpop.f32.mrb[0].mxu0
      %v2398 = vadd.f32 %v2267, %v2397
      %2399 = vmatprep.mubr.f32.mxu0 0.0
      %v2400 = vand.u32 %v160, 4294901760
      %v2401 = vsub.f32 %v160, %v2400
      %v2402 = vand.u32 %v2401, 4294901760
      %2403 = vmatmul.mubr.f32.gmra.mrb[0].mxu0 %v2402
      %v2404 = vpop.f32.mrb[0].mxu0
      %v2405 = vadd.f32 %v2273, %v2404
      %v2406 = vpop.f32.mrb[0].mxu0
      %v2407 = vadd.f32 %v2275, %v2406
      %2408 = vmatprep.mubr.f32.mxu0 0.0
      %v2409 = vand.u32 %v163, 4294901760
      %v2410 = vsub.f32 %v163, %v2409
      %v2411 = vand.u32 %v2410, 4294901760
      %2412 = vmatmul.mubr.f32.gmra.mrb[0].mxu0 %v2411
      %v2413 = vpop.f32.mrb[0].mxu0
      %v2414 = vadd.f32 %v2281, %v2413
      %v2415 = vpop.f32.mrb[0].mxu0
      %v2416 = vadd.f32 %v2283, %v2415
      %2417 = vdwg.mxu0
      %v2418 = vand.u32 %v229, 4294901760
      %v2419 = vsub.f32 %v229, %v2418
      %v2420 = vand.u32 %v2419, 4294901760
      %2421 = vmatprep.subr.mxu0 %v2420
      %v2422 = vand.u32 %v228, 4294901760
      %v2423 = vsub.f32 %v228, %v2422
      %v2424 = vand.u32 %v2423, 4294901760
      %2425 = vmatpush1.msra.mxu0 %v2424
      %v2426 = vand.u32 %v231, 4294901760
      %v2427 = vsub.f32 %v231, %v2426
      %v2428 = vand.u32 %v2427, 4294901760
      %2429 = vmatprep.subr.mxu0 %v2428
      %v2430 = vand.u32 %v230, 4294901760
      %v2431 = vsub.f32 %v230, %v2430
      %v2432 = vand.u32 %v2431, 4294901760
      %2433 = vmatpush1.msra.mxu0 %v2432
      %v2434 = vand.u32 %v233, 4294901760
      %v2435 = vsub.f32 %v233, %v2434
      %v2436 = vand.u32 %v2435, 4294901760
      %2437 = vmatprep.subr.mxu0 %v2436
      %v2438 = vand.u32 %v232, 4294901760
      %v2439 = vsub.f32 %v232, %v2438
      %v2440 = vand.u32 %v2439, 4294901760
      %2441 = vmatpush1.msra.mxu0 %v2440
      %v2442 = vand.u32 %v235, 4294901760
      %v2443 = vsub.f32 %v235, %v2442
      %v2444 = vand.u32 %v2443, 4294901760
      %2445 = vmatprep.subr.mxu0 %v2444
      %v2446 = vand.u32 %v234, 4294901760
      %v2447 = vsub.f32 %v234, %v2446
      %v2448 = vand.u32 %v2447, 4294901760
      %2449 = vmatpush1.msra.mxu0 %v2448
      %v2450 = vand.u32 %v237, 4294901760
      %v2451 = vsub.f32 %v237, %v2450
      %v2452 = vand.u32 %v2451, 4294901760
      %2453 = vmatprep.subr.mxu0 %v2452
      %v2454 = vand.u32 %v236, 4294901760
      %v2455 = vsub.f32 %v236, %v2454
      %v2456 = vand.u32 %v2455, 4294901760
      %2457 = vmatpush1.msra.mxu0 %v2456
      %v2458 = vand.u32 %v239, 4294901760
      %v2459 = vsub.f32 %v239, %v2458
      %v2460 = vand.u32 %v2459, 4294901760
      %2461 = vmatprep.subr.mxu0 %v2460
      %v2462 = vand.u32 %v238, 4294901760
      %v2463 = vsub.f32 %v238, %v2462
      %v2464 = vand.u32 %v2463, 4294901760
      %2465 = vmatpush1.msra.mxu0 %v2464
      %v2466 = vand.u32 %v241, 4294901760
      %v2467 = vsub.f32 %v241, %v2466
      %v2468 = vand.u32 %v2467, 4294901760
      %2469 = vmatprep.subr.mxu0 %v2468
      %v2470 = vand.u32 %v240, 4294901760
      %v2471 = vsub.f32 %v240, %v2470
      %v2472 = vand.u32 %v2471, 4294901760
      %2473 = vmatpush1.msra.mxu0 %v2472
      %v2474 = vand.u32 %v243, 4294901760
      %v2475 = vsub.f32 %v243, %v2474
      %v2476 = vand.u32 %v2475, 4294901760
      %2477 = vmatprep.subr.mxu0 %v2476
      %v2478 = vand.u32 %v242, 4294901760
      %v2479 = vsub.f32 %v242, %v2478
      %v2480 = vand.u32 %v2479, 4294901760
      %2481 = vmatpush1.msra.mxu0 %v2480
      %v2482 = vand.u32 %v245, 4294901760
      %v2483 = vsub.f32 %v245, %v2482
      %v2484 = vand.u32 %v2483, 4294901760
      %2485 = vmatprep.subr.mxu0 %v2484
      %v2486 = vand.u32 %v244, 4294901760
      %v2487 = vsub.f32 %v244, %v2486
      %v2488 = vand.u32 %v2487, 4294901760
      %2489 = vmatpush1.msra.mxu0 %v2488
      %v2490 = vand.u32 %v247, 4294901760
      %v2491 = vsub.f32 %v247, %v2490
      %v2492 = vand.u32 %v2491, 4294901760
      %2493 = vmatprep.subr.mxu0 %v2492
      %v2494 = vand.u32 %v246, 4294901760
      %v2495 = vsub.f32 %v246, %v2494
      %v2496 = vand.u32 %v2495, 4294901760
      %2497 = vmatpush1.msra.mxu0 %v2496
      %v2498 = vand.u32 %v249, 4294901760
      %v2499 = vsub.f32 %v249, %v2498
      %v2500 = vand.u32 %v2499, 4294901760
      %2501 = vmatprep.subr.mxu0 %v2500
      %v2502 = vand.u32 %v248, 4294901760
      %v2503 = vsub.f32 %v248, %v2502
      %v2504 = vand.u32 %v2503, 4294901760
      %2505 = vmatpush1.msra.mxu0 %v2504
      %v2506 = vand.u32 %v251, 4294901760
      %v2507 = vsub.f32 %v251, %v2506
      %v2508 = vand.u32 %v2507, 4294901760
      %2509 = vmatprep.subr.mxu0 %v2508
      %v2510 = vand.u32 %v250, 4294901760
      %v2511 = vsub.f32 %v250, %v2510
      %v2512 = vand.u32 %v2511, 4294901760
      %2513 = vmatpush1.msra.mxu0 %v2512
      %v2514 = vand.u32 %v253, 4294901760
      %v2515 = vsub.f32 %v253, %v2514
      %v2516 = vand.u32 %v2515, 4294901760
      %2517 = vmatprep.subr.mxu0 %v2516
      %v2518 = vand.u32 %v252, 4294901760
      %v2519 = vsub.f32 %v252, %v2518
      %v2520 = vand.u32 %v2519, 4294901760
      %2521 = vmatpush1.msra.mxu0 %v2520
      %v2522 = vand.u32 %v255, 4294901760
      %v2523 = vsub.f32 %v255, %v2522
      %v2524 = vand.u32 %v2523, 4294901760
      %2525 = vmatprep.subr.mxu0 %v2524
      %v2526 = vand.u32 %v254, 4294901760
      %v2527 = vsub.f32 %v254, %v2526
      %v2528 = vand.u32 %v2527, 4294901760
      %2529 = vmatpush1.msra.mxu0 %v2528
      %v2530 = vand.u32 %v257, 4294901760
      %v2531 = vsub.f32 %v257, %v2530
      %v2532 = vand.u32 %v2531, 4294901760
      %2533 = vmatprep.subr.mxu0 %v2532
      %v2534 = vand.u32 %v256, 4294901760
      %v2535 = vsub.f32 %v256, %v2534
      %v2536 = vand.u32 %v2535, 4294901760
      %2537 = vmatpush1.msra.mxu0 %v2536
      %v2538 = vand.u32 %v259, 4294901760
      %v2539 = vsub.f32 %v259, %v2538
      %v2540 = vand.u32 %v2539, 4294901760
      %2541 = vmatprep.subr.mxu0 %v2540
      %v2542 = vand.u32 %v258, 4294901760
      %v2543 = vsub.f32 %v258, %v2542
      %v2544 = vand.u32 %v2543, 4294901760
      %2545 = vmatpush1.msra.mxu0 %v2544
      %2546 = vmatprep.subr.mxu0 0.0
      %2547 = vmatpush1.msra.mxu0 0.0
      %2548 = vmatprep.subr.mxu0 0.0
      %2549 = vmatpush1.msra.mxu0 0.0
      %2550 = vmatprep.subr.mxu0 0.0
      %2551 = vmatpush1.msra.mxu0 0.0
      %2552 = vmatprep.subr.mxu0 0.0
      %2553 = vmatpush1.msra.mxu0 0.0
      %2554 = vmatprep.subr.mxu0 0.0
      %2555 = vmatpush1.msra.mxu0 0.0
      %2556 = vmatprep.subr.mxu0 0.0
      %2557 = vmatpush1.msra.mxu0 0.0
      %2558 = vmatprep.subr.mxu0 0.0
      %2559 = vmatpush1.msra.mxu0 0.0
      %2560 = vmatprep.subr.mxu0 0.0
      %2561 = vmatpush1.msra.mxu0 0.0
      %2562 = vmatprep.subr.mxu0 0.0
      %2563 = vmatpush1.msra.mxu0 0.0
      %2564 = vmatprep.subr.mxu0 0.0
      %2565 = vmatpush1.msra.mxu0 0.0
      %2566 = vmatprep.subr.mxu0 0.0
      %2567 = vmatpush1.msra.mxu0 0.0
      %2568 = vmatprep.subr.mxu0 0.0
      %2569 = vmatpush1.msra.mxu0 0.0
      %2570 = vmatprep.subr.mxu0 0.0
      %2571 = vmatpush1.msra.mxu0 0.0
      %2572 = vmatprep.subr.mxu0 0.0
      %2573 = vmatpush1.msra.mxu0 0.0
      %2574 = vmatprep.subr.mxu0 0.0
      %2575 = vmatpush1.msra.mxu0 0.0
      %2576 = vmatprep.subr.mxu0 0.0
      %2577 = vmatpush1.msra.mxu0 0.0
      %2578 = vmatprep.mubr.f32.mxu0 0.0
      %v2579 = vand.u32 %v154, 4294901760
      %2580 = vmatmul.mubr.f32.gmra.mrb[0].mxu0 %v2579
      %v2581 = vpop.f32.mrb[0].mxu0
      %v2582 = vadd.f32 %v2387, %v2581
      %v2583 = vpop.f32.mrb[0].mxu0
      %v2584 = vadd.f32 %v2389, %v2583
      %2585 = vmatprep.mubr.f32.mxu0 0.0
      %v2586 = vand.u32 %v157, 4294901760
      %2587 = vmatmul.mubr.f32.gmra.mrb[0].mxu0 %v2586
      %v2588 = vpop.f32.mrb[0].mxu0
      %v2589 = vadd.f32 %v2396, %v2588
      %v2590 = vpop.f32.mrb[0].mxu0
      %v2591 = vadd.f32 %v2398, %v2590
      %2592 = vmatprep.mubr.f32.mxu0 0.0
      %v2593 = vand.u32 %v160, 4294901760
      %2594 = vmatmul.mubr.f32.gmra.mrb[0].mxu0 %v2593
      %v2595 = vpop.f32.mrb[0].mxu0
      %v2596 = vadd.f32 %v2405, %v2595
      %v2597 = vpop.f32.mrb[0].mxu0
      %v2598 = vadd.f32 %v2407, %v2597
      %2599 = vmatprep.mubr.f32.mxu0 0.0
      %v2600 = vand.u32 %v163, 4294901760
      %2601 = vmatmul.mubr.f32.gmra.mrb[0].mxu0 %v2600
      %v2602 = vpop.f32.mrb[0].mxu0
      %v2603 = vadd.f32 %v2414, %v2602
      %v2604 = vpop.f32.mrb[0].mxu0
      %v2605 = vadd.f32 %v2416, %v2604
      %2606 = vdwg.mxu0
      %v2607 = vand.u32 %v229, 4294901760
      %2608 = vmatprep.subr.mxu0 %v2607
      %v2609 = vand.u32 %v228, 4294901760
      %2610 = vmatpush1.msra.mxu0 %v2609
      %v2611 = vand.u32 %v231, 4294901760
      %2612 = vmatprep.subr.mxu0 %v2611
      %v2613 = vand.u32 %v230, 4294901760
      %2614 = vmatpush1.msra.mxu0 %v2613
      %v2615 = vand.u32 %v233, 4294901760
      %2616 = vmatprep.subr.mxu0 %v2615
      %v2617 = vand.u32 %v232, 4294901760
      %2618 = vmatpush1.msra.mxu0 %v2617
      %v2619 = vand.u32 %v235, 4294901760
      %2620 = vmatprep.subr.mxu0 %v2619
      %v2621 = vand.u32 %v234, 4294901760
      %2622 = vmatpush1.msra.mxu0 %v2621
      %v2623 = vand.u32 %v237, 4294901760
      %2624 = vmatprep.subr.mxu0 %v2623
      %v2625 = vand.u32 %v236, 4294901760
      %2626 = vmatpush1.msra.mxu0 %v2625
      %v2627 = vand.u32 %v239, 4294901760
      %2628 = vmatprep.subr.mxu0 %v2627
      %v2629 = vand.u32 %v238, 4294901760
      %2630 = vmatpush1.msra.mxu0 %v2629
      %v2631 = vand.u32 %v241, 4294901760
      %2632 = vmatprep.subr.mxu0 %v2631
      %v2633 = vand.u32 %v240, 4294901760
      %2634 = vmatpush1.msra.mxu0 %v2633
      %v2635 = vand.u32 %v243, 4294901760
      %2636 = vmatprep.subr.mxu0 %v2635
      %v2637 = vand.u32 %v242, 4294901760
      %2638 = vmatpush1.msra.mxu0 %v2637
      %v2639 = vand.u32 %v245, 4294901760
      %2640 = vmatprep.subr.mxu0 %v2639
      %v2641 = vand.u32 %v244, 4294901760
      %2642 = vmatpush1.msra.mxu0 %v2641
      %v2643 = vand.u32 %v247, 4294901760
      %2644 = vmatprep.subr.mxu0 %v2643
      %v2645 = vand.u32 %v246, 4294901760
      %2646 = vmatpush1.msra.mxu0 %v2645
      %v2647 = vand.u32 %v249, 4294901760
      %2648 = vmatprep.subr.mxu0 %v2647
      %v2649 = vand.u32 %v248, 4294901760
      %2650 = vmatpush1.msra.mxu0 %v2649
      %v2651 = vand.u32 %v251, 4294901760
      %2652 = vmatprep.subr.mxu0 %v2651
      %v2653 = vand.u32 %v250, 4294901760
      %2654 = vmatpush1.msra.mxu0 %v2653
      %v2655 = vand.u32 %v253, 4294901760
      %2656 = vmatprep.subr.mxu0 %v2655
      %v2657 = vand.u32 %v252, 4294901760
      %2658 = vmatpush1.msra.mxu0 %v2657
      %v2659 = vand.u32 %v255, 4294901760
      %2660 = vmatprep.subr.mxu0 %v2659
      %v2661 = vand.u32 %v254, 4294901760
      %2662 = vmatpush1.msra.mxu0 %v2661
      %v2663 = vand.u32 %v257, 4294901760
      %2664 = vmatprep.subr.mxu0 %v2663
      %v2665 = vand.u32 %v256, 4294901760
      %2666 = vmatpush1.msra.mxu0 %v2665
      %v2667 = vand.u32 %v259, 4294901760
      %2668 = vmatprep.subr.mxu0 %v2667
      %v2669 = vand.u32 %v258, 4294901760
      %2670 = vmatpush1.msra.mxu0 %v2669
      %2671 = vmatprep.subr.mxu0 0.0
      %2672 = vmatpush1.msra.mxu0 0.0
      %2673 = vmatprep.subr.mxu0 0.0
      %2674 = vmatpush1.msra.mxu0 0.0
      %2675 = vmatprep.subr.mxu0 0.0
      %2676 = vmatpush1.msra.mxu0 0.0
      %2677 = vmatprep.subr.mxu0 0.0
      %2678 = vmatpush1.msra.mxu0 0.0
      %2679 = vmatprep.subr.mxu0 0.0
      %2680 = vmatpush1.msra.mxu0 0.0
      %2681 = vmatprep.subr.mxu0 0.0
      %2682 = vmatpush1.msra.mxu0 0.0
      %2683 = vmatprep.subr.mxu0 0.0
      %2684 = vmatpush1.msra.mxu0 0.0
      %2685 = vmatprep.subr.mxu0 0.0
      %2686 = vmatpush1.msra.mxu0 0.0
      %2687 = vmatprep.subr.mxu0 0.0
      %2688 = vmatpush1.msra.mxu0 0.0
      %2689 = vmatprep.subr.mxu0 0.0
      %2690 = vmatpush1.msra.mxu0 0.0
      %2691 = vmatprep.subr.mxu0 0.0
      %2692 = vmatpush1.msra.mxu0 0.0
      %2693 = vmatprep.subr.mxu0 0.0
      %2694 = vmatpush1.msra.mxu0 0.0
      %2695 = vmatprep.subr.mxu0 0.0
      %2696 = vmatpush1.msra.mxu0 0.0
      %2697 = vmatprep.subr.mxu0 0.0
      %2698 = vmatpush1.msra.mxu0 0.0
      %2699 = vmatprep.subr.mxu0 0.0
      %2700 = vmatpush1.msra.mxu0 0.0
      %2701 = vmatprep.subr.mxu0 0.0
      %2702 = vmatpush1.msra.mxu0 0.0
      %2703 = vmatprep.mubr.f32.mxu0 0.0
      %v2704 = vand.u32 %v154, 4294901760
      %2705 = vmatmul.mubr.f32.gmra.mrb[0].mxu0 %v2704
      %v2706 = vpop.f32.mrb[0].mxu0
      %v2707 = vadd.f32 %v2582, %v2706
      %v2708 = vpop.f32.mrb[0].mxu0
      %v2709 = vadd.f32 %v2584, %v2708
      %2710 = vmatprep.mubr.f32.mxu0 0.0
      %v2711 = vand.u32 %v157, 4294901760
      %2712 = vmatmul.mubr.f32.gmra.mrb[0].mxu0 %v2711
      %v2713 = vpop.f32.mrb[0].mxu0
      %v2714 = vadd.f32 %v2589, %v2713
      %v2715 = vpop.f32.mrb[0].mxu0
      %v2716 = vadd.f32 %v2591, %v2715
      %2717 = vmatprep.mubr.f32.mxu0 0.0
      %v2718 = vand.u32 %v160, 4294901760
      %2719 = vmatmul.mubr.f32.gmra.mrb[0].mxu0 %v2718
      %v2720 = vpop.f32.mrb[0].mxu0
      %v2721 = vadd.f32 %v2596, %v2720
      %v2722 = vpop.f32.mrb[0].mxu0
      %v2723 = vadd.f32 %v2598, %v2722
      %2724 = vmatprep.mubr.f32.mxu0 0.0
      %v2725 = vand.u32 %v163, 4294901760
      %2726 = vmatmul.mubr.f32.gmra.mrb[0].mxu0 %v2725
      %v2727 = vpop.f32.mrb[0].mxu0
      %v2728 = vadd.f32 %v2603, %v2727
      %v2729 = vpop.f32.mrb[0].mxu0
      %v2730 = vadd.f32 %v2605, %v2729
      %2731 = vdwg.mxu0
      %2732 = vst [vmem:[%s150] sm:$0xff] %v2707
      %2733 = vst [vmem:[%s150 + $0x8] sm:$0xff] %v2709
      %2734 = vst [vmem:[%s150 + $0x10] sm:$0xff] %v2714
      %2735 = vst [vmem:[%s150 + $0x18] sm:$0xff] %v2716
      %2736 = vst [vmem:[%s150 + $0x20] sm:$0xff] %v2721
      %2737 = vst [vmem:[%s150 + $0x28] sm:$0xff] %v2723
      %2738 = vst [vmem:[%s150 + $0x30] sm:$0xff] %v2728
      %2739 = vst [vmem:[%s150 + $0x38] sm:$0xff] %v2730
      %s2740 = smul.u32 4, %s13
      %p2741 = scmp.lt.s32.totalorder %s2740, 7
      %s2742 = scalar_select %p2741, %s2740, 7
      %s2743 = smul.addr %s2742, 2
      %s2744 = smul.addr %s2743, 8
      %s2745 = scalar_lea.vmem %s2, %s2744
      // Predicated region
      $region29: #{drop_freq_forward.3} parent=27 // pred_check
        %p2746 = pneg %p78
      $region30: #{drop_freq_forward.3} parent=27 // pred_check_branch
        %2748 = sbr.rel (%p2746) target = $region32
      $region31: #{drop_freq_forward.3} parent=27 // pred_region
        %s2749 = smul.u32 4, %s13
      $region32: #{drop_freq_forward.3} parent=27 // pred_fallthru
        _
    $region28: #{drop_freq_forward.3} parent=5 // pred_fallthru
      _
    %p2750 = scmp.le.s32.totalorder 2, %s8
    // Predicated region
    $region33: #{drop_freq_forward.3} parent=5 // pred_check
      %p2751 = pneg %p2750
    $region34: #{drop_freq_forward.3} parent=5 // pred_check_branch
      %2753 = sbr.rel (%p2751) target = $region36
    $region35: #{drop_freq_forward.3} parent=5 // pred_region
      %s2754 = ssub.s32 %s8, 2
      // Predicated region
      $region37: #{drop_freq_forward.3} parent=35 // pred_check
        %p2755 = pneg %p84
      $region38: #{drop_freq_forward.3} parent=35 // pred_check_branch
        %2757 = sbr.rel (%p2755) target = $region40
      $region39: #{drop_freq_forward.3} parent=35 // pred_region
        %s2758 = smul.u32 4, %s14
        %p2759 = scmp.lt.s32.totalorder %s2758, 7
        %s2760 = scalar_select %p2759, %s2758, 7
        %s2761 = smul.addr %s2760, 2
        %s2762 = smul.addr %s2761, 8
        %s2763 = scalar_lea.vmem %s2, %s2762
      $region40: #{drop_freq_forward.3} parent=35 // pred_fallthru
        _
    $region36: #{drop_freq_forward.3} parent=5 // pred_fallthru
      _
  $region6: #{drop_freq_forward.3} parent=0 // loop_footer
    %s12 = sadd.s32 1, %s8
  $region7: #{drop_freq_forward.3} parent=0 // loop_footer_branch
    %7 = sbr.rel target = $region3
  $region8: #{drop_freq_forward.3} parent=0 // loop_exit
    _

</llo_original>
